<compile_context>
chip_gen: v5e
topology: v5e:2x2
jax: 0.10.0
libtpu: 0.0.40
codegen_flags: <defaults>
</compile_context>

<pallas_src>
import jax
import jax.numpy as jnp
from jax import lax
from jax.experimental import pallas as pl
from jax.experimental.pallas import tpu as pltpu

C1 = 0.01 ** 2
C2 = 0.03 ** 2


def _ssim_kernel(x_ref, y_ref, o_ref):
    # x_ref / y_ref / o_ref: (B, H, W) blocks of whole channel-images.
    x = x_ref[...].astype(jnp.float32)
    y = y_ref[...].astype(jnp.float32)

    def sum3(a, axis):
        # 3-tap sum along `axis` with 1-px reflection at the borders:
        #   out[i] = a[i-1] + a[i] + a[i+1],  a[-1] := a[1],  a[n] := a[n-2]
        n = a.shape[axis]

        def sl(lo, hi):
            idx = [slice(None)] * a.ndim
            idx[axis] = slice(lo, hi)
            return a[tuple(idx)]

        prev = jnp.concatenate([sl(1, 2), sl(0, n - 1)], axis=axis)
        nxt = jnp.concatenate([sl(1, n), sl(n - 2, n - 1)], axis=axis)
        return a + prev + nxt

    def pool3x3(a):
        # Separable 3x3 average pool with reflection padding.
        return sum3(sum3(a, 2), 1) * (1.0 / 9.0)

    mu_x = pool3x3(x)
    mu_y = pool3x3(y)
    sigma_x = pool3x3(x * x) - mu_x * mu_x
    sigma_y = pool3x3(y * y) - mu_y * mu_y
    sigma_xy = pool3x3(x * y) - mu_x * mu_y

    ssim_n = (2.0 * mu_x * mu_y + C1) * (2.0 * sigma_xy + C2)
    ssim_d = (mu_x * mu_x + mu_y * mu_y + C1) * (sigma_x + sigma_y + C2)

    # approx=False keeps bit-level parity with the f32 reference; flip to
    # approx=True to move the reciprocal onto the EUP slot essentially free.
    inv_d = pl.reciprocal(ssim_d, approx=False)
    out = jnp.clip((1.0 - ssim_n * inv_d) * 0.5, 0.0, 1.0)
    o_ref[...] = out.astype(o_ref.dtype)


def _pick_images_per_block(nc, h, w):
    """Images per grid step: big enough to amortize per-step overhead, small
    enough that double-buffered inputs + output + f32 temporaries stay well
    under the 32 MiB scoped VMEM limit on every TPU generation."""
    budget_elems = (512 * 1024) // 4          # ~512 KiB of f32 per block
    b = max(1, min(nc, budget_elems // max(1, h * w)))
    while b > 1 and nc % b != 0:              # b must divide nc
        b -= 1
    return b


def ssim(x, y):
    """SSIM loss map, matching the PyTorch SSIM module forward.

    x, y: (N, C, H, W) float arrays. Returns (N, C, H, W).
    """
    N, C, H, W = x.shape
    nc = N * C
    b = _pick_images_per_block(nc, H, W)

    # Free reshapes (NCHW is contiguous) -- no HBM traffic, unlike jnp.pad.
    xf = x.reshape(nc, H, W)
    yf = y.reshape(nc, H, W)

    out = pl.pallas_call(
        _ssim_kernel,
        out_shape=jax.ShapeDtypeStruct((nc, H, W), x.dtype),
        grid_spec=pltpu.PrefetchScalarGridSpec(
            num_scalar_prefetch=0,
            grid=(nc // b,),
            in_specs=[
                pl.BlockSpec((b, H, W), lambda i: (i, 0, 0)),
                pl.BlockSpec((b, H, W), lambda i: (i, 0, 0)),
            ],
            out_specs=pl.BlockSpec((b, H, W), lambda i: (i, 0, 0)),
        ),
        compiler_params=pltpu.CompilerParams(
            # TODO(synk): pltpu.CORE_PARALLEL here on v7x to use both TCs.
            dimension_semantics=("parallel",),
            vmem_limit_bytes=32 * 1024 * 1024,
        ),
    )(xf, yf)
    return out.reshape(N, C, H, W)


def _ssim_reference(x, y):
    # Pure-JAX reference mirroring the PyTorch module, for a sanity check.
    xp = jnp.pad(x, ((0, 0), (0, 0), (1, 1), (1, 1)), mode="reflect")
    yp = jnp.pad(y, ((0, 0), (0, 0), (1, 1), (1, 1)), mode="reflect")

    def pool(a):
        return lax.reduce_window(
            a, 0.0, lax.add, (1, 1, 3, 3), (1, 1, 1, 1), "VALID"
        ) / 9.0

    mu_x, mu_y = pool(xp), pool(yp)
    sig_x = pool(xp * xp) - mu_x ** 2
    sig_y = pool(yp * yp) - mu_y ** 2
    sig_xy = pool(xp * yp) - mu_x * mu_y
    n = (2 * mu_x * mu_y + C1) * (2 * sig_xy + C2)
    d = (mu_x ** 2 + mu_y ** 2 + C1) * (sig_x + sig_y + C2)
    return jnp.clip((1 - n / d) / 2, 0.0, 1.0)


if __name__ == "__main__":
    key = jax.random.PRNGKey(0)
    kx, ky = jax.random.split(key)
    N, C, H, W = 2, 4, 16, 16
    x = jax.random.uniform(kx, (N, C, H, W), dtype=jnp.float32)
    y = jax.random.uniform(ky, (N, C, H, W), dtype=jnp.float32)

    out = jax.block_until_ready(ssim(x, y))
    ref = jax.block_until_ready(_ssim_reference(x, y))

    assert out.shape == (N, C, H, W)
    assert jnp.max(jnp.abs(out - ref)) < 1e-5
    print("KERNEL_OK")
</pallas_src>

<mosaic_0001>
module attributes {stable_mosaic.version = 11 : i64} {
  func.func @_ssim_kernel(%arg0: i32, %arg1: memref<8x16x16xf32, #tpu.memory_space<vmem>>, %arg2: memref<8x16x16xf32, #tpu.memory_space<vmem>>, %arg3: memref<8x16x16xf32, #tpu.memory_space<vmem>>) attributes {dimension_semantics = [#tpu.dimension_semantics<parallel>], iteration_bounds = array<i64: 1>, scalar_prefetch = 0 : i64, scratch_operands = 0 : i64, tpu.core_type = #tpu.core_type<tc>, window_params = [{transform_indices = @transform_0, window_bounds = array<i64: 8, 16, 16>}, {transform_indices = @transform_1, window_bounds = array<i64: 8, 16, 16>}, {transform_indices = @transform_2, window_bounds = array<i64: 8, 16, 16>}]} {
    %c0 = arith.constant 0 : index
    %c0_0 = arith.constant 0 : index
    %c0_1 = arith.constant 0 : index
    %0 = vector.load %arg1[%c0, %c0_0, %c0_1] : memref<8x16x16xf32, #tpu.memory_space<vmem>>, vector<8x16x16xf32>
    %c0_2 = arith.constant 0 : index
    %c0_3 = arith.constant 0 : index
    %c0_4 = arith.constant 0 : index
    %1 = vector.load %arg2[%c0_2, %c0_3, %c0_4] : memref<8x16x16xf32, #tpu.memory_space<vmem>>, vector<8x16x16xf32>
    %2 = vector.extract_strided_slice %0 {offsets = [0, 0, 1], sizes = [8, 16, 1], strides = [1, 1, 1]} : vector<8x16x16xf32> to vector<8x16x1xf32>
    %3 = vector.extract_strided_slice %0 {offsets = [0, 0, 0], sizes = [8, 16, 15], strides = [1, 1, 1]} : vector<8x16x16xf32> to vector<8x16x15xf32>
    %4 = tpu.concatenate %2, %3 in 2 : vector<8x16x1xf32>, vector<8x16x15xf32> -> vector<8x16x16xf32>
    %5 = vector.extract_strided_slice %0 {offsets = [0, 0, 1], sizes = [8, 16, 15], strides = [1, 1, 1]} : vector<8x16x16xf32> to vector<8x16x15xf32>
    %6 = vector.extract_strided_slice %0 {offsets = [0, 0, 14], sizes = [8, 16, 1], strides = [1, 1, 1]} : vector<8x16x16xf32> to vector<8x16x1xf32>
    %7 = tpu.concatenate %5, %6 in 2 : vector<8x16x15xf32>, vector<8x16x1xf32> -> vector<8x16x16xf32>
    %8 = arith.addf %0, %4 : vector<8x16x16xf32>
    %9 = arith.addf %8, %7 : vector<8x16x16xf32>
    %10 = vector.extract_strided_slice %9 {offsets = [0, 1, 0], sizes = [8, 1, 16], strides = [1, 1, 1]} : vector<8x16x16xf32> to vector<8x1x16xf32>
    %11 = vector.extract_strided_slice %9 {offsets = [0, 0, 0], sizes = [8, 15, 16], strides = [1, 1, 1]} : vector<8x16x16xf32> to vector<8x15x16xf32>
    %12 = tpu.concatenate %10, %11 in 1 : vector<8x1x16xf32>, vector<8x15x16xf32> -> vector<8x16x16xf32>
    %13 = vector.extract_strided_slice %9 {offsets = [0, 1, 0], sizes = [8, 15, 16], strides = [1, 1, 1]} : vector<8x16x16xf32> to vector<8x15x16xf32>
    %14 = vector.extract_strided_slice %9 {offsets = [0, 14, 0], sizes = [8, 1, 16], strides = [1, 1, 1]} : vector<8x16x16xf32> to vector<8x1x16xf32>
    %15 = tpu.concatenate %13, %14 in 1 : vector<8x15x16xf32>, vector<8x1x16xf32> -> vector<8x16x16xf32>
    %16 = arith.addf %9, %12 : vector<8x16x16xf32>
    %17 = arith.addf %16, %15 : vector<8x16x16xf32>
    %cst = arith.constant 0.111111112 : f32
    %18 = vector.broadcast %cst : f32 to vector<8x16x16xf32>
    %19 = arith.mulf %17, %18 : vector<8x16x16xf32>
    %20 = vector.extract_strided_slice %1 {offsets = [0, 0, 1], sizes = [8, 16, 1], strides = [1, 1, 1]} : vector<8x16x16xf32> to vector<8x16x1xf32>
    %21 = vector.extract_strided_slice %1 {offsets = [0, 0, 0], sizes = [8, 16, 15], strides = [1, 1, 1]} : vector<8x16x16xf32> to vector<8x16x15xf32>
    %22 = tpu.concatenate %20, %21 in 2 : vector<8x16x1xf32>, vector<8x16x15xf32> -> vector<8x16x16xf32>
    %23 = vector.extract_strided_slice %1 {offsets = [0, 0, 1], sizes = [8, 16, 15], strides = [1, 1, 1]} : vector<8x16x16xf32> to vector<8x16x15xf32>
    %24 = vector.extract_strided_slice %1 {offsets = [0, 0, 14], sizes = [8, 16, 1], strides = [1, 1, 1]} : vector<8x16x16xf32> to vector<8x16x1xf32>
    %25 = tpu.concatenate %23, %24 in 2 : vector<8x16x15xf32>, vector<8x16x1xf32> -> vector<8x16x16xf32>
    %26 = arith.addf %1, %22 : vector<8x16x16xf32>
    %27 = arith.addf %26, %25 : vector<8x16x16xf32>
    %28 = vector.extract_strided_slice %27 {offsets = [0, 1, 0], sizes = [8, 1, 16], strides = [1, 1, 1]} : vector<8x16x16xf32> to vector<8x1x16xf32>
    %29 = vector.extract_strided_slice %27 {offsets = [0, 0, 0], sizes = [8, 15, 16], strides = [1, 1, 1]} : vector<8x16x16xf32> to vector<8x15x16xf32>
    %30 = tpu.concatenate %28, %29 in 1 : vector<8x1x16xf32>, vector<8x15x16xf32> -> vector<8x16x16xf32>
    %31 = vector.extract_strided_slice %27 {offsets = [0, 1, 0], sizes = [8, 15, 16], strides = [1, 1, 1]} : vector<8x16x16xf32> to vector<8x15x16xf32>
    %32 = vector.extract_strided_slice %27 {offsets = [0, 14, 0], sizes = [8, 1, 16], strides = [1, 1, 1]} : vector<8x16x16xf32> to vector<8x1x16xf32>
    %33 = tpu.concatenate %31, %32 in 1 : vector<8x15x16xf32>, vector<8x1x16xf32> -> vector<8x16x16xf32>
    %34 = arith.addf %27, %30 : vector<8x16x16xf32>
    %35 = arith.addf %34, %33 : vector<8x16x16xf32>
    %cst_5 = arith.constant 0.111111112 : f32
    %36 = vector.broadcast %cst_5 : f32 to vector<8x16x16xf32>
    %37 = arith.mulf %35, %36 : vector<8x16x16xf32>
    %38 = arith.mulf %0, %0 : vector<8x16x16xf32>
    %39 = vector.extract_strided_slice %38 {offsets = [0, 0, 1], sizes = [8, 16, 1], strides = [1, 1, 1]} : vector<8x16x16xf32> to vector<8x16x1xf32>
    %40 = vector.extract_strided_slice %38 {offsets = [0, 0, 0], sizes = [8, 16, 15], strides = [1, 1, 1]} : vector<8x16x16xf32> to vector<8x16x15xf32>
    %41 = tpu.concatenate %39, %40 in 2 : vector<8x16x1xf32>, vector<8x16x15xf32> -> vector<8x16x16xf32>
    %42 = vector.extract_strided_slice %38 {offsets = [0, 0, 1], sizes = [8, 16, 15], strides = [1, 1, 1]} : vector<8x16x16xf32> to vector<8x16x15xf32>
    %43 = vector.extract_strided_slice %38 {offsets = [0, 0, 14], sizes = [8, 16, 1], strides = [1, 1, 1]} : vector<8x16x16xf32> to vector<8x16x1xf32>
    %44 = tpu.concatenate %42, %43 in 2 : vector<8x16x15xf32>, vector<8x16x1xf32> -> vector<8x16x16xf32>
    %45 = arith.addf %38, %41 : vector<8x16x16xf32>
    %46 = arith.addf %45, %44 : vector<8x16x16xf32>
    %47 = vector.extract_strided_slice %46 {offsets = [0, 1, 0], sizes = [8, 1, 16], strides = [1, 1, 1]} : vector<8x16x16xf32> to vector<8x1x16xf32>
    %48 = vector.extract_strided_slice %46 {offsets = [0, 0, 0], sizes = [8, 15, 16], strides = [1, 1, 1]} : vector<8x16x16xf32> to vector<8x15x16xf32>
    %49 = tpu.concatenate %47, %48 in 1 : vector<8x1x16xf32>, vector<8x15x16xf32> -> vector<8x16x16xf32>
    %50 = vector.extract_strided_slice %46 {offsets = [0, 1, 0], sizes = [8, 15, 16], strides = [1, 1, 1]} : vector<8x16x16xf32> to vector<8x15x16xf32>
    %51 = vector.extract_strided_slice %46 {offsets = [0, 14, 0], sizes = [8, 1, 16], strides = [1, 1, 1]} : vector<8x16x16xf32> to vector<8x1x16xf32>
    %52 = tpu.concatenate %50, %51 in 1 : vector<8x15x16xf32>, vector<8x1x16xf32> -> vector<8x16x16xf32>
    %53 = arith.addf %46, %49 : vector<8x16x16xf32>
    %54 = arith.addf %53, %52 : vector<8x16x16xf32>
    %cst_6 = arith.constant 0.111111112 : f32
    %55 = vector.broadcast %cst_6 : f32 to vector<8x16x16xf32>
    %56 = arith.mulf %54, %55 : vector<8x16x16xf32>
    %57 = arith.mulf %19, %19 : vector<8x16x16xf32>
    %58 = arith.subf %56, %57 : vector<8x16x16xf32>
    %59 = arith.mulf %1, %1 : vector<8x16x16xf32>
    %60 = vector.extract_strided_slice %59 {offsets = [0, 0, 1], sizes = [8, 16, 1], strides = [1, 1, 1]} : vector<8x16x16xf32> to vector<8x16x1xf32>
    %61 = vector.extract_strided_slice %59 {offsets = [0, 0, 0], sizes = [8, 16, 15], strides = [1, 1, 1]} : vector<8x16x16xf32> to vector<8x16x15xf32>
    %62 = tpu.concatenate %60, %61 in 2 : vector<8x16x1xf32>, vector<8x16x15xf32> -> vector<8x16x16xf32>
    %63 = vector.extract_strided_slice %59 {offsets = [0, 0, 1], sizes = [8, 16, 15], strides = [1, 1, 1]} : vector<8x16x16xf32> to vector<8x16x15xf32>
    %64 = vector.extract_strided_slice %59 {offsets = [0, 0, 14], sizes = [8, 16, 1], strides = [1, 1, 1]} : vector<8x16x16xf32> to vector<8x16x1xf32>
    %65 = tpu.concatenate %63, %64 in 2 : vector<8x16x15xf32>, vector<8x16x1xf32> -> vector<8x16x16xf32>
    %66 = arith.addf %59, %62 : vector<8x16x16xf32>
    %67 = arith.addf %66, %65 : vector<8x16x16xf32>
    %68 = vector.extract_strided_slice %67 {offsets = [0, 1, 0], sizes = [8, 1, 16], strides = [1, 1, 1]} : vector<8x16x16xf32> to vector<8x1x16xf32>
    %69 = vector.extract_strided_slice %67 {offsets = [0, 0, 0], sizes = [8, 15, 16], strides = [1, 1, 1]} : vector<8x16x16xf32> to vector<8x15x16xf32>
    %70 = tpu.concatenate %68, %69 in 1 : vector<8x1x16xf32>, vector<8x15x16xf32> -> vector<8x16x16xf32>
    %71 = vector.extract_strided_slice %67 {offsets = [0, 1, 0], sizes = [8, 15, 16], strides = [1, 1, 1]} : vector<8x16x16xf32> to vector<8x15x16xf32>
    %72 = vector.extract_strided_slice %67 {offsets = [0, 14, 0], sizes = [8, 1, 16], strides = [1, 1, 1]} : vector<8x16x16xf32> to vector<8x1x16xf32>
    %73 = tpu.concatenate %71, %72 in 1 : vector<8x15x16xf32>, vector<8x1x16xf32> -> vector<8x16x16xf32>
    %74 = arith.addf %67, %70 : vector<8x16x16xf32>
    %75 = arith.addf %74, %73 : vector<8x16x16xf32>
    %cst_7 = arith.constant 0.111111112 : f32
    %76 = vector.broadcast %cst_7 : f32 to vector<8x16x16xf32>
    %77 = arith.mulf %75, %76 : vector<8x16x16xf32>
    %78 = arith.mulf %37, %37 : vector<8x16x16xf32>
    %79 = arith.subf %77, %78 : vector<8x16x16xf32>
    %80 = arith.mulf %0, %1 : vector<8x16x16xf32>
    %81 = vector.extract_strided_slice %80 {offsets = [0, 0, 1], sizes = [8, 16, 1], strides = [1, 1, 1]} : vector<8x16x16xf32> to vector<8x16x1xf32>
    %82 = vector.extract_strided_slice %80 {offsets = [0, 0, 0], sizes = [8, 16, 15], strides = [1, 1, 1]} : vector<8x16x16xf32> to vector<8x16x15xf32>
    %83 = tpu.concatenate %81, %82 in 2 : vector<8x16x1xf32>, vector<8x16x15xf32> -> vector<8x16x16xf32>
    %84 = vector.extract_strided_slice %80 {offsets = [0, 0, 1], sizes = [8, 16, 15], strides = [1, 1, 1]} : vector<8x16x16xf32> to vector<8x16x15xf32>
    %85 = vector.extract_strided_slice %80 {offsets = [0, 0, 14], sizes = [8, 16, 1], strides = [1, 1, 1]} : vector<8x16x16xf32> to vector<8x16x1xf32>
    %86 = tpu.concatenate %84, %85 in 2 : vector<8x16x15xf32>, vector<8x16x1xf32> -> vector<8x16x16xf32>
    %87 = arith.addf %80, %83 : vector<8x16x16xf32>
    %88 = arith.addf %87, %86 : vector<8x16x16xf32>
    %89 = vector.extract_strided_slice %88 {offsets = [0, 1, 0], sizes = [8, 1, 16], strides = [1, 1, 1]} : vector<8x16x16xf32> to vector<8x1x16xf32>
    %90 = vector.extract_strided_slice %88 {offsets = [0, 0, 0], sizes = [8, 15, 16], strides = [1, 1, 1]} : vector<8x16x16xf32> to vector<8x15x16xf32>
    %91 = tpu.concatenate %89, %90 in 1 : vector<8x1x16xf32>, vector<8x15x16xf32> -> vector<8x16x16xf32>
    %92 = vector.extract_strided_slice %88 {offsets = [0, 1, 0], sizes = [8, 15, 16], strides = [1, 1, 1]} : vector<8x16x16xf32> to vector<8x15x16xf32>
    %93 = vector.extract_strided_slice %88 {offsets = [0, 14, 0], sizes = [8, 1, 16], strides = [1, 1, 1]} : vector<8x16x16xf32> to vector<8x1x16xf32>
    %94 = tpu.concatenate %92, %93 in 1 : vector<8x15x16xf32>, vector<8x1x16xf32> -> vector<8x16x16xf32>
    %95 = arith.addf %88, %91 : vector<8x16x16xf32>
    %96 = arith.addf %95, %94 : vector<8x16x16xf32>
    %cst_8 = arith.constant 0.111111112 : f32
    %97 = vector.broadcast %cst_8 : f32 to vector<8x16x16xf32>
    %98 = arith.mulf %96, %97 : vector<8x16x16xf32>
    %99 = arith.mulf %19, %37 : vector<8x16x16xf32>
    %100 = arith.subf %98, %99 : vector<8x16x16xf32>
    %cst_9 = arith.constant 2.000000e+00 : f32
    %101 = vector.broadcast %cst_9 : f32 to vector<8x16x16xf32>
    %102 = arith.mulf %101, %19 : vector<8x16x16xf32>
    %103 = arith.mulf %102, %37 : vector<8x16x16xf32>
    %cst_10 = arith.constant 9.99999974E-5 : f32
    %104 = vector.broadcast %cst_10 : f32 to vector<8x16x16xf32>
    %105 = arith.addf %103, %104 : vector<8x16x16xf32>
    %cst_11 = arith.constant 2.000000e+00 : f32
    %106 = vector.broadcast %cst_11 : f32 to vector<8x16x16xf32>
    %107 = arith.mulf %106, %100 : vector<8x16x16xf32>
    %cst_12 = arith.constant 8.99999984E-4 : f32
    %108 = vector.broadcast %cst_12 : f32 to vector<8x16x16xf32>
    %109 = arith.addf %107, %108 : vector<8x16x16xf32>
    %110 = arith.mulf %105, %109 : vector<8x16x16xf32>
    %111 = arith.mulf %19, %19 : vector<8x16x16xf32>
    %112 = arith.mulf %37, %37 : vector<8x16x16xf32>
    %113 = arith.addf %111, %112 : vector<8x16x16xf32>
    %cst_13 = arith.constant 9.99999974E-5 : f32
    %114 = vector.broadcast %cst_13 : f32 to vector<8x16x16xf32>
    %115 = arith.addf %113, %114 : vector<8x16x16xf32>
    %116 = arith.addf %58, %79 : vector<8x16x16xf32>
    %cst_14 = arith.constant 8.99999984E-4 : f32
    %117 = vector.broadcast %cst_14 : f32 to vector<8x16x16xf32>
    %118 = arith.addf %116, %117 : vector<8x16x16xf32>
    %119 = arith.mulf %115, %118 : vector<8x16x16xf32>
    %120 = tpu.reciprocal %119 : vector<8x16x16xf32> -> vector<8x16x16xf32>
    %121 = arith.mulf %110, %120 : vector<8x16x16xf32>
    %cst_15 = arith.constant 1.000000e+00 : f32
    %122 = vector.broadcast %cst_15 : f32 to vector<8x16x16xf32>
    %123 = arith.subf %122, %121 : vector<8x16x16xf32>
    %cst_16 = arith.constant 5.000000e-01 : f32
    %124 = vector.broadcast %cst_16 : f32 to vector<8x16x16xf32>
    %125 = arith.mulf %123, %124 : vector<8x16x16xf32>
    %cst_17 = arith.constant 0.000000e+00 : f32
    %cst_18 = arith.constant 1.000000e+00 : f32
    %126 = vector.broadcast %cst_17 : f32 to vector<8x16x16xf32>
    %127 = arith.maximumf %126, %125 : vector<8x16x16xf32>
    %128 = vector.broadcast %cst_18 : f32 to vector<8x16x16xf32>
    %129 = arith.minimumf %128, %127 : vector<8x16x16xf32>
    %c0_19 = arith.constant 0 : index
    %c0_20 = arith.constant 0 : index
    %c0_21 = arith.constant 0 : index
    %130 = vector.load %arg3[%c0_19, %c0_20, %c0_21] : memref<8x16x16xf32, #tpu.memory_space<vmem>>, vector<8x16x16xf32>
    tpu.vector_store %arg3[%c0_19, %c0_20, %c0_21], %129 {strides = array<i32>} : memref<8x16x16xf32, #tpu.memory_space<vmem>>, vector<8x16x16xf32>,
    return
  }
  func.func @transform_0(%arg0: i32) -> (i32, i32, i32) {
    %c0_i32 = arith.constant 0 : i32
    %c0_i32_0 = arith.constant 0 : i32
    %c0_i32_1 = arith.constant 0 : i32
    return %arg0, %c0_i32, %c0_i32_0 : i32, i32, i32
  }
  func.func @transform_1(%arg0: i32) -> (i32, i32, i32) {
    %c0_i32 = arith.constant 0 : i32
    %c0_i32_0 = arith.constant 0 : i32
    %c0_i32_1 = arith.constant 0 : i32
    return %arg0, %c0_i32, %c0_i32_0 : i32, i32, i32
  }
  func.func @transform_2(%arg0: i32) -> (i32, i32, i32) {
    %c0_i32 = arith.constant 0 : i32
    %c0_i32_0 = arith.constant 0 : i32
    %c0_i32_1 = arith.constant 0 : i32
    return %arg0, %c0_i32, %c0_i32_0 : i32, i32, i32
  }
}

</mosaic_0001>

<llo_original>
// kernel: tpu_custom_call.1
$region0: #{tpu_custom_call.1}
  #allocation0 [shape = 'u32[]', space=smem, size = 0x4, offset = 0x4, fixed_abs, tag = 'smem constant byte address 0x4 - core index']
  #allocation1 [shape = 'u32[72,128]{1,0:T(1,128)}', space=vmem, size = 0x9000, scoped, tag = 'internal scratch']
  %s0 = inlined_call_operand.hbm [shape: f32[8,16,16], index: 0, kind: input, shape index: {}]
  %s1 = inlined_call_operand.hbm [shape: f32[8,16,16], index: 1, kind: input, shape index: {}]
  %s2 = inlined_call_operand.hbm [shape: f32[8,16,16], index: 2, kind: output, shape index: {}]
  %s3 = sld [smem:[#allocation0]]
  $region26: #{tpu_custom_call.1} parent=0
    _
  %s5 = ssub.s32 1, %s3
  %s6 = scalar_select 0, %s5, %s3
  $region1: #{tpu_custom_call.1} parent=0
    #allocation2 [shape = 'u8[65536]{0}', space=vmem, size = 0x10000, scoped, tag = 'input window, operand 0, single buffered']
    #allocation3 [shape = 's32[1]{0}', space=sflag, size = 0x4, scoped, tag = 'scoped memory for tpu_custom_call.1']
    #allocation4 [shape = 's32[1]{0}', space=sflag, size = 0x4, scoped, tag = 'scoped memory for tpu_custom_call.1']
    #allocation5 [shape = 'u8[65536]{0}', space=vmem, size = 0x10000, scoped, tag = 'input window, operand 1, single buffered']
    #allocation6 [shape = 's32[1]{0}', space=sflag, size = 0x4, scoped, tag = 'scoped memory for tpu_custom_call.1']
    #allocation7 [shape = 'u8[65536]{0}', space=vmem, size = 0x10000, scoped, tag = 'output window, operand 0, single buffered']
    %7 = vsyncpa [#allocation3], 0
    %8 = vsyncpa [#allocation6], 0
    %9 = vsyncpa [#allocation4], 0
    // Predicated region
    $region2: #{tpu_custom_call.1} parent=1 // pred_check
      _
    $region3: #{tpu_custom_call.1} parent=1 // pred_check_branch
      %11 = sbr.rel (0) target = $region5
    $region4: #{tpu_custom_call.1} parent=1 // pred_region
      %13 = vsyncadd [#allocation3], 0
      %s14 = sshll.u32 %s0, 4
      %s15 = int_to_ptr.hbm [resolvable:$true] %s14
      %s16 = sshll.u32 [#allocation2], 4
      %s17 = int_to_ptr.vmem [resolvable:$true] %s16
      %22 = dma.hbm_to_vmem [thread:$0]  %s15, 2048, %s17, [#allocation3], 128, 128, 8
    $region5: #{tpu_custom_call.1} parent=1 // pred_fallthru
      _
    // Predicated region
    $region6: #{tpu_custom_call.1} parent=1 // pred_check
      _
    $region7: #{tpu_custom_call.1} parent=1 // pred_check_branch
      %24 = sbr.rel (0) target = $region9
    $region8: #{tpu_custom_call.1} parent=1 // pred_region
      %26 = vsyncadd [#allocation6], 0
      %s27 = sshll.u32 %s1, 4
      %s28 = int_to_ptr.hbm [resolvable:$true] %s27
      %s29 = sshll.u32 [#allocation5], 4
      %s30 = int_to_ptr.vmem [resolvable:$true] %s29
      %35 = dma.hbm_to_vmem [thread:$0]  %s28, 2048, %s30, [#allocation6], 128, 128, 8
    $region9: #{tpu_custom_call.1} parent=1 // pred_fallthru
      _
    // Predicated region
    $region10: #{tpu_custom_call.1} parent=1 // pred_check
      _
    $region11: #{tpu_custom_call.1} parent=1 // pred_check_branch
      %37 = sbr.rel (0) target = $region13
    $region12: #{tpu_custom_call.1} parent=1 // pred_region
      %39 = dma.done [#allocation3], 2048
    $region13: #{tpu_custom_call.1} parent=1 // pred_fallthru
      _
    // Predicated region
    $region14: #{tpu_custom_call.1} parent=1 // pred_check
      _
    $region15: #{tpu_custom_call.1} parent=1 // pred_check_branch
      %41 = sbr.rel (0) target = $region17
    $region16: #{tpu_custom_call.1} parent=1 // pred_region
      %43 = dma.done [#allocation6], 2048
    $region17: #{tpu_custom_call.1} parent=1 // pred_fallthru
      _
    %v44 = vld [vmem:[#allocation2] sm:$0xff]
    %v45 = vld [vmem:[#allocation2 + $0x8] sm:$0xff]
    %v46 = vld [vmem:[#allocation2 + $0x10] sm:$0xff]
    %v47 = vld [vmem:[#allocation2 + $0x18] sm:$0xff]
    %v48 = vld [vmem:[#allocation2 + $0x20] sm:$0xff]
    %v49 = vld [vmem:[#allocation2 + $0x28] sm:$0xff]
    %v50 = vld [vmem:[#allocation2 + $0x30] sm:$0xff]
    %v51 = vld [vmem:[#allocation2 + $0x38] sm:$0xff]
    %v52 = vld [vmem:[#allocation2 + $0x40] sm:$0xff]
    %v53 = vld [vmem:[#allocation2 + $0x48] sm:$0xff]
    %v54 = vld [vmem:[#allocation2 + $0x50] sm:$0xff]
    %v55 = vld [vmem:[#allocation2 + $0x58] sm:$0xff]
    %v56 = vld [vmem:[#allocation2 + $0x60] sm:$0xff]
    %v57 = vld [vmem:[#allocation2 + $0x68] sm:$0xff]
    %v58 = vld [vmem:[#allocation2 + $0x70] sm:$0xff]
    %v59 = vld [vmem:[#allocation2 + $0x78] sm:$0xff]
    %v60 = vld [vmem:[#allocation5] sm:$0xff]
    %v61 = vld [vmem:[#allocation5 + $0x8] sm:$0xff]
    %v62 = vld [vmem:[#allocation5 + $0x10] sm:$0xff]
    %v63 = vld [vmem:[#allocation5 + $0x18] sm:$0xff]
    %v64 = vld [vmem:[#allocation5 + $0x20] sm:$0xff]
    %v65 = vld [vmem:[#allocation5 + $0x28] sm:$0xff]
    %v66 = vld [vmem:[#allocation5 + $0x30] sm:$0xff]
    %v67 = vld [vmem:[#allocation5 + $0x38] sm:$0xff]
    %v68 = vld [vmem:[#allocation5 + $0x40] sm:$0xff]
    %v69 = vld [vmem:[#allocation5 + $0x48] sm:$0xff]
    %v70 = vld [vmem:[#allocation5 + $0x50] sm:$0xff]
    %v71 = vld [vmem:[#allocation5 + $0x58] sm:$0xff]
    %v72 = vld [vmem:[#allocation5 + $0x60] sm:$0xff]
    %v73 = vld [vmem:[#allocation5 + $0x68] sm:$0xff]
    %v74 = vld [vmem:[#allocation5 + $0x70] sm:$0xff]
    %v75 = vld [vmem:[#allocation5 + $0x78] sm:$0xff]
    %92 = vrot.lane.b32.xlu0 %v44, 127
    %v93 = vpop.permute.xlu0 %92
    %94 = vrot.lane.b32.xlu0 %v45, 127
    %v95 = vpop.permute.xlu0 %94
    %96 = vrot.lane.b32.xlu0 %v46, 127
    %v97 = vpop.permute.xlu0 %96
    %98 = vrot.lane.b32.xlu0 %v47, 127
    %v99 = vpop.permute.xlu0 %98
    %100 = vrot.lane.b32.xlu0 %v48, 127
    %v101 = vpop.permute.xlu0 %100
    %102 = vrot.lane.b32.xlu0 %v49, 127
    %v103 = vpop.permute.xlu0 %102
    %104 = vrot.lane.b32.xlu0 %v50, 127
    %v105 = vpop.permute.xlu0 %104
    %106 = vrot.lane.b32.xlu0 %v51, 127
    %v107 = vpop.permute.xlu0 %106
    %108 = vrot.lane.b32.xlu0 %v52, 127
    %v109 = vpop.permute.xlu0 %108
    %110 = vrot.lane.b32.xlu0 %v53, 127
    %v111 = vpop.permute.xlu0 %110
    %112 = vrot.lane.b32.xlu0 %v54, 127
    %v113 = vpop.permute.xlu0 %112
    %114 = vrot.lane.b32.xlu0 %v55, 127
    %v115 = vpop.permute.xlu0 %114
    %116 = vrot.lane.b32.xlu0 %v56, 127
    %v117 = vpop.permute.xlu0 %116
    %118 = vrot.lane.b32.xlu0 %v57, 127
    %v119 = vpop.permute.xlu0 %118
    %120 = vrot.lane.b32.xlu0 %v58, 127
    %v121 = vpop.permute.xlu0 %120
    %122 = vrot.lane.b32.xlu0 %v59, 127
    %v123 = vpop.permute.xlu0 %122
    %140 = vrot.lane.b32.xlu0 %v44, 1
    %v141 = vpop.permute.xlu0 %140
    %142 = vrot.lane.b32.xlu0 %v45, 1
    %v143 = vpop.permute.xlu0 %142
    %144 = vrot.lane.b32.xlu0 %v46, 1
    %v145 = vpop.permute.xlu0 %144
    %146 = vrot.lane.b32.xlu0 %v47, 1
    %v147 = vpop.permute.xlu0 %146
    %148 = vrot.lane.b32.xlu0 %v48, 1
    %v149 = vpop.permute.xlu0 %148
    %150 = vrot.lane.b32.xlu0 %v49, 1
    %v151 = vpop.permute.xlu0 %150
    %152 = vrot.lane.b32.xlu0 %v50, 1
    %v153 = vpop.permute.xlu0 %152
    %154 = vrot.lane.b32.xlu0 %v51, 1
    %v155 = vpop.permute.xlu0 %154
    %156 = vrot.lane.b32.xlu0 %v52, 1
    %v157 = vpop.permute.xlu0 %156
    %158 = vrot.lane.b32.xlu0 %v53, 1
    %v159 = vpop.permute.xlu0 %158
    %160 = vrot.lane.b32.xlu0 %v54, 1
    %v161 = vpop.permute.xlu0 %160
    %162 = vrot.lane.b32.xlu0 %v55, 1
    %v163 = vpop.permute.xlu0 %162
    %164 = vrot.lane.b32.xlu0 %v56, 1
    %v165 = vpop.permute.xlu0 %164
    %166 = vrot.lane.b32.xlu0 %v57, 1
    %v167 = vpop.permute.xlu0 %166
    %168 = vrot.lane.b32.xlu0 %v58, 1
    %v169 = vpop.permute.xlu0 %168
    %170 = vrot.lane.b32.xlu0 %v59, 1
    %v171 = vpop.permute.xlu0 %170
    %vm188 = vcmask 7168
    %v189 = vsel %vm188, %v93, %v141
    %v190 = vsel %vm188, %v95, %v143
    %v191 = vsel %vm188, %v97, %v145
    %v192 = vsel %vm188, %v99, %v147
    %v193 = vsel %vm188, %v101, %v149
    %v194 = vsel %vm188, %v103, %v151
    %v195 = vsel %vm188, %v105, %v153
    %v196 = vsel %vm188, %v107, %v155
    %v197 = vsel %vm188, %v109, %v157
    %v198 = vsel %vm188, %v111, %v159
    %v199 = vsel %vm188, %v113, %v161
    %v200 = vsel %vm188, %v115, %v163
    %v201 = vsel %vm188, %v117, %v165
    %v202 = vsel %vm188, %v119, %v167
    %v203 = vsel %vm188, %v121, %v169
    %v204 = vsel %vm188, %v123, %v171
    %vm205 = vcmask 121856
    %v206 = vsel %vm205, %v93, %v141
    %v207 = vsel %vm205, %v95, %v143
    %v208 = vsel %vm205, %v97, %v145
    %v209 = vsel %vm205, %v99, %v147
    %v210 = vsel %vm205, %v101, %v149
    %v211 = vsel %vm205, %v103, %v151
    %v212 = vsel %vm205, %v105, %v153
    %v213 = vsel %vm205, %v107, %v155
    %v214 = vsel %vm205, %v109, %v157
    %v215 = vsel %vm205, %v111, %v159
    %v216 = vsel %vm205, %v113, %v161
    %v217 = vsel %vm205, %v115, %v163
    %v218 = vsel %vm205, %v117, %v165
    %v219 = vsel %vm205, %v119, %v167
    %v220 = vsel %vm205, %v121, %v169
    %v221 = vsel %vm205, %v123, %v171
    %v222 = vadd.f32 %v44, %v189
    %v223 = vadd.f32 %v45, %v190
    %v224 = vadd.f32 %v46, %v191
    %v225 = vadd.f32 %v47, %v192
    %v226 = vadd.f32 %v48, %v193
    %v227 = vadd.f32 %v49, %v194
    %v228 = vadd.f32 %v50, %v195
    %v229 = vadd.f32 %v51, %v196
    %v230 = vadd.f32 %v52, %v197
    %v231 = vadd.f32 %v53, %v198
    %v232 = vadd.f32 %v54, %v199
    %v233 = vadd.f32 %v55, %v200
    %v234 = vadd.f32 %v56, %v201
    %v235 = vadd.f32 %v57, %v202
    %v236 = vadd.f32 %v58, %v203
    %v237 = vadd.f32 %v59, %v204
    %v238 = vadd.f32 %v222, %v206
    %v239 = vadd.f32 %v223, %v207
    %v240 = vadd.f32 %v224, %v208
    %v241 = vadd.f32 %v225, %v209
    %v242 = vadd.f32 %v226, %v210
    %v243 = vadd.f32 %v227, %v211
    %v244 = vadd.f32 %v228, %v212
    %v245 = vadd.f32 %v229, %v213
    %v246 = vadd.f32 %v230, %v214
    %v247 = vadd.f32 %v231, %v215
    %v248 = vadd.f32 %v232, %v216
    %v249 = vadd.f32 %v233, %v217
    %v250 = vadd.f32 %v234, %v218
    %v251 = vadd.f32 %v235, %v219
    %v252 = vadd.f32 %v236, %v220
    %v253 = vadd.f32 %v237, %v221
    %v262 = vrot.slane %v238, 1
    %v263 = vrot.slane %v240, 1
    %v264 = vrot.slane %v242, 1
    %v265 = vrot.slane %v244, 1
    %v266 = vrot.slane %v246, 1
    %v267 = vrot.slane %v248, 1
    %v268 = vrot.slane %v250, 1
    %v269 = vrot.slane %v252, 1
    %vm286 = vcmask 1040384
    %v287 = vrot.slane %v238, 7
    %v288 = vrot.slane %v239, 7
    %v289 = vsel %vm286, %v287, %v288
    %v290 = vrot.slane %v240, 7
    %v291 = vrot.slane %v241, 7
    %v292 = vsel %vm286, %v290, %v291
    %v293 = vrot.slane %v242, 7
    %v294 = vrot.slane %v243, 7
    %v295 = vsel %vm286, %v293, %v294
    %v296 = vrot.slane %v244, 7
    %v297 = vrot.slane %v245, 7
    %v298 = vsel %vm286, %v296, %v297
    %v299 = vrot.slane %v246, 7
    %v300 = vrot.slane %v247, 7
    %v301 = vsel %vm286, %v299, %v300
    %v302 = vrot.slane %v248, 7
    %v303 = vrot.slane %v249, 7
    %v304 = vsel %vm286, %v302, %v303
    %v305 = vrot.slane %v250, 7
    %v306 = vrot.slane %v251, 7
    %v307 = vsel %vm286, %v305, %v306
    %v308 = vrot.slane %v252, 7
    %v309 = vrot.slane %v253, 7
    %v310 = vsel %vm286, %v308, %v309
    %v327 = vsel %vm286, %v262, %v287
    %v328 = vsel %vm286, %v263, %v290
    %v329 = vsel %vm286, %v264, %v293
    %v330 = vsel %vm286, %v265, %v296
    %v331 = vsel %vm286, %v266, %v299
    %v332 = vsel %vm286, %v267, %v302
    %v333 = vsel %vm286, %v268, %v305
    %v334 = vsel %vm286, %v269, %v308
    %vm335 = vcmask 1046528
    %v336 = vrot.slane %v239, 1
    %v337 = vsel %vm335, %v262, %v336
    %v338 = vrot.slane %v241, 1
    %v339 = vsel %vm335, %v263, %v338
    %v340 = vrot.slane %v243, 1
    %v341 = vsel %vm335, %v264, %v340
    %v342 = vrot.slane %v245, 1
    %v343 = vsel %vm335, %v265, %v342
    %v344 = vrot.slane %v247, 1
    %v345 = vsel %vm335, %v266, %v344
    %v346 = vrot.slane %v249, 1
    %v347 = vsel %vm335, %v267, %v346
    %v348 = vrot.slane %v251, 1
    %v349 = vsel %vm335, %v268, %v348
    %v350 = vrot.slane %v253, 1
    %v351 = vsel %vm335, %v269, %v350
    %v376 = vsel %vm335, %v336, %v288
    %v377 = vsel %vm335, %v338, %v291
    %v378 = vsel %vm335, %v340, %v294
    %v379 = vsel %vm335, %v342, %v297
    %v380 = vsel %vm335, %v344, %v300
    %v381 = vsel %vm335, %v346, %v303
    %v382 = vsel %vm335, %v348, %v306
    %v383 = vsel %vm335, %v350, %v309
    %v384 = vadd.f32 %v238, %v327
    %v385 = vadd.f32 %v239, %v289
    %v386 = vadd.f32 %v240, %v328
    %v387 = vadd.f32 %v241, %v292
    %v388 = vadd.f32 %v242, %v329
    %v389 = vadd.f32 %v243, %v295
    %v390 = vadd.f32 %v244, %v330
    %v391 = vadd.f32 %v245, %v298
    %v392 = vadd.f32 %v246, %v331
    %v393 = vadd.f32 %v247, %v301
    %v394 = vadd.f32 %v248, %v332
    %v395 = vadd.f32 %v249, %v304
    %v396 = vadd.f32 %v250, %v333
    %v397 = vadd.f32 %v251, %v307
    %v398 = vadd.f32 %v252, %v334
    %v399 = vadd.f32 %v253, %v310
    %v400 = vadd.f32 %v384, %v337
    %v401 = vadd.f32 %v385, %v376
    %v402 = vadd.f32 %v386, %v339
    %v403 = vadd.f32 %v387, %v377
    %v404 = vadd.f32 %v388, %v341
    %v405 = vadd.f32 %v389, %v378
    %v406 = vadd.f32 %v390, %v343
    %v407 = vadd.f32 %v391, %v379
    %v408 = vadd.f32 %v392, %v345
    %v409 = vadd.f32 %v393, %v380
    %v410 = vadd.f32 %v394, %v347
    %v411 = vadd.f32 %v395, %v381
    %v412 = vadd.f32 %v396, %v349
    %v413 = vadd.f32 %v397, %v382
    %v414 = vadd.f32 %v398, %v351
    %v415 = vadd.f32 %v399, %v383
    %v416 = vmul.f32 %v400, 0.11111111
    %v417 = vmul.f32 %v401, 0.11111111
    %v418 = vmul.f32 %v402, 0.11111111
    %v419 = vmul.f32 %v403, 0.11111111
    %v420 = vmul.f32 %v404, 0.11111111
    %v421 = vmul.f32 %v405, 0.11111111
    %v422 = vmul.f32 %v406, 0.11111111
    %v423 = vmul.f32 %v407, 0.11111111
    %v424 = vmul.f32 %v408, 0.11111111
    %v425 = vmul.f32 %v409, 0.11111111
    %v426 = vmul.f32 %v410, 0.11111111
    %v427 = vmul.f32 %v411, 0.11111111
    %v428 = vmul.f32 %v412, 0.11111111
    %v429 = vmul.f32 %v413, 0.11111111
    %v430 = vmul.f32 %v414, 0.11111111
    %v431 = vmul.f32 %v415, 0.11111111
    %448 = vrot.lane.b32.xlu0 %v60, 127
    %v449 = vpop.permute.xlu0 %448
    %450 = vrot.lane.b32.xlu0 %v61, 127
    %v451 = vpop.permute.xlu0 %450
    %452 = vrot.lane.b32.xlu0 %v62, 127
    %v453 = vpop.permute.xlu0 %452
    %454 = vrot.lane.b32.xlu0 %v63, 127
    %v455 = vpop.permute.xlu0 %454
    %456 = vrot.lane.b32.xlu0 %v64, 127
    %v457 = vpop.permute.xlu0 %456
    %458 = vrot.lane.b32.xlu0 %v65, 127
    %v459 = vpop.permute.xlu0 %458
    %460 = vrot.lane.b32.xlu0 %v66, 127
    %v461 = vpop.permute.xlu0 %460
    %462 = vrot.lane.b32.xlu0 %v67, 127
    %v463 = vpop.permute.xlu0 %462
    %464 = vrot.lane.b32.xlu0 %v68, 127
    %v465 = vpop.permute.xlu0 %464
    %466 = vrot.lane.b32.xlu0 %v69, 127
    %v467 = vpop.permute.xlu0 %466
    %468 = vrot.lane.b32.xlu0 %v70, 127
    %v469 = vpop.permute.xlu0 %468
    %470 = vrot.lane.b32.xlu0 %v71, 127
    %v471 = vpop.permute.xlu0 %470
    %472 = vrot.lane.b32.xlu0 %v72, 127
    %v473 = vpop.permute.xlu0 %472
    %474 = vrot.lane.b32.xlu0 %v73, 127
    %v475 = vpop.permute.xlu0 %474
    %476 = vrot.lane.b32.xlu0 %v74, 127
    %v477 = vpop.permute.xlu0 %476
    %478 = vrot.lane.b32.xlu0 %v75, 127
    %v479 = vpop.permute.xlu0 %478
    %496 = vrot.lane.b32.xlu0 %v60, 1
    %v497 = vpop.permute.xlu0 %496
    %498 = vrot.lane.b32.xlu0 %v61, 1
    %v499 = vpop.permute.xlu0 %498
    %500 = vrot.lane.b32.xlu0 %v62, 1
    %v501 = vpop.permute.xlu0 %500
    %502 = vrot.lane.b32.xlu0 %v63, 1
    %v503 = vpop.permute.xlu0 %502
    %504 = vrot.lane.b32.xlu0 %v64, 1
    %v505 = vpop.permute.xlu0 %504
    %506 = vrot.lane.b32.xlu0 %v65, 1
    %v507 = vpop.permute.xlu0 %506
    %508 = vrot.lane.b32.xlu0 %v66, 1
    %v509 = vpop.permute.xlu0 %508
    %510 = vrot.lane.b32.xlu0 %v67, 1
    %v511 = vpop.permute.xlu0 %510
    %512 = vrot.lane.b32.xlu0 %v68, 1
    %v513 = vpop.permute.xlu0 %512
    %514 = vrot.lane.b32.xlu0 %v69, 1
    %v515 = vpop.permute.xlu0 %514
    %516 = vrot.lane.b32.xlu0 %v70, 1
    %v517 = vpop.permute.xlu0 %516
    %518 = vrot.lane.b32.xlu0 %v71, 1
    %v519 = vpop.permute.xlu0 %518
    %520 = vrot.lane.b32.xlu0 %v72, 1
    %v521 = vpop.permute.xlu0 %520
    %522 = vrot.lane.b32.xlu0 %v73, 1
    %v523 = vpop.permute.xlu0 %522
    %524 = vrot.lane.b32.xlu0 %v74, 1
    %v525 = vpop.permute.xlu0 %524
    %526 = vrot.lane.b32.xlu0 %v75, 1
    %v527 = vpop.permute.xlu0 %526
    %v544 = vsel %vm188, %v449, %v497
    %v545 = vsel %vm188, %v451, %v499
    %v546 = vsel %vm188, %v453, %v501
    %v547 = vsel %vm188, %v455, %v503
    %v548 = vsel %vm188, %v457, %v505
    %v549 = vsel %vm188, %v459, %v507
    %v550 = vsel %vm188, %v461, %v509
    %v551 = vsel %vm188, %v463, %v511
    %v552 = vsel %vm188, %v465, %v513
    %v553 = vsel %vm188, %v467, %v515
    %v554 = vsel %vm188, %v469, %v517
    %v555 = vsel %vm188, %v471, %v519
    %v556 = vsel %vm188, %v473, %v521
    %v557 = vsel %vm188, %v475, %v523
    %v558 = vsel %vm188, %v477, %v525
    %v559 = vsel %vm188, %v479, %v527
    %v560 = vsel %vm205, %v449, %v497
    %v561 = vsel %vm205, %v451, %v499
    %v562 = vsel %vm205, %v453, %v501
    %v563 = vsel %vm205, %v455, %v503
    %v564 = vsel %vm205, %v457, %v505
    %v565 = vsel %vm205, %v459, %v507
    %v566 = vsel %vm205, %v461, %v509
    %v567 = vsel %vm205, %v463, %v511
    %v568 = vsel %vm205, %v465, %v513
    %v569 = vsel %vm205, %v467, %v515
    %v570 = vsel %vm205, %v469, %v517
    %v571 = vsel %vm205, %v471, %v519
    %v572 = vsel %vm205, %v473, %v521
    %v573 = vsel %vm205, %v475, %v523
    %v574 = vsel %vm205, %v477, %v525
    %v575 = vsel %vm205, %v479, %v527
    %v576 = vadd.f32 %v60, %v544
    %v577 = vadd.f32 %v61, %v545
    %v578 = vadd.f32 %v62, %v546
    %v579 = vadd.f32 %v63, %v547
    %v580 = vadd.f32 %v64, %v548
    %v581 = vadd.f32 %v65, %v549
    %v582 = vadd.f32 %v66, %v550
    %v583 = vadd.f32 %v67, %v551
    %v584 = vadd.f32 %v68, %v552
    %v585 = vadd.f32 %v69, %v553
    %v586 = vadd.f32 %v70, %v554
    %v587 = vadd.f32 %v71, %v555
    %v588 = vadd.f32 %v72, %v556
    %v589 = vadd.f32 %v73, %v557
    %v590 = vadd.f32 %v74, %v558
    %v591 = vadd.f32 %v75, %v559
    %v592 = vadd.f32 %v576, %v560
    %v593 = vadd.f32 %v577, %v561
    %v594 = vadd.f32 %v578, %v562
    %v595 = vadd.f32 %v579, %v563
    %v596 = vadd.f32 %v580, %v564
    %v597 = vadd.f32 %v581, %v565
    %v598 = vadd.f32 %v582, %v566
    %v599 = vadd.f32 %v583, %v567
    %v600 = vadd.f32 %v584, %v568
    %v601 = vadd.f32 %v585, %v569
    %v602 = vadd.f32 %v586, %v570
    %v603 = vadd.f32 %v587, %v571
    %v604 = vadd.f32 %v588, %v572
    %v605 = vadd.f32 %v589, %v573
    %v606 = vadd.f32 %v590, %v574
    %v607 = vadd.f32 %v591, %v575
    %v616 = vrot.slane %v592, 1
    %v617 = vrot.slane %v594, 1
    %v618 = vrot.slane %v596, 1
    %v619 = vrot.slane %v598, 1
    %v620 = vrot.slane %v600, 1
    %v621 = vrot.slane %v602, 1
    %v622 = vrot.slane %v604, 1
    %v623 = vrot.slane %v606, 1
    %v640 = vrot.slane %v592, 7
    %v641 = vrot.slane %v593, 7
    %v642 = vsel %vm286, %v640, %v641
    %v643 = vrot.slane %v594, 7
    %v644 = vrot.slane %v595, 7
    %v645 = vsel %vm286, %v643, %v644
    %v646 = vrot.slane %v596, 7
    %v647 = vrot.slane %v597, 7
    %v648 = vsel %vm286, %v646, %v647
    %v649 = vrot.slane %v598, 7
    %v650 = vrot.slane %v599, 7
    %v651 = vsel %vm286, %v649, %v650
    %v652 = vrot.slane %v600, 7
    %v653 = vrot.slane %v601, 7
    %v654 = vsel %vm286, %v652, %v653
    %v655 = vrot.slane %v602, 7
    %v656 = vrot.slane %v603, 7
    %v657 = vsel %vm286, %v655, %v656
    %v658 = vrot.slane %v604, 7
    %v659 = vrot.slane %v605, 7
    %v660 = vsel %vm286, %v658, %v659
    %v661 = vrot.slane %v606, 7
    %v662 = vrot.slane %v607, 7
    %v663 = vsel %vm286, %v661, %v662
    %v680 = vsel %vm286, %v616, %v640
    %v681 = vsel %vm286, %v617, %v643
    %v682 = vsel %vm286, %v618, %v646
    %v683 = vsel %vm286, %v619, %v649
    %v684 = vsel %vm286, %v620, %v652
    %v685 = vsel %vm286, %v621, %v655
    %v686 = vsel %vm286, %v622, %v658
    %v687 = vsel %vm286, %v623, %v661
    %v688 = vrot.slane %v593, 1
    %v689 = vsel %vm335, %v616, %v688
    %v690 = vrot.slane %v595, 1
    %v691 = vsel %vm335, %v617, %v690
    %v692 = vrot.slane %v597, 1
    %v693 = vsel %vm335, %v618, %v692
    %v694 = vrot.slane %v599, 1
    %v695 = vsel %vm335, %v619, %v694
    %v696 = vrot.slane %v601, 1
    %v697 = vsel %vm335, %v620, %v696
    %v698 = vrot.slane %v603, 1
    %v699 = vsel %vm335, %v621, %v698
    %v700 = vrot.slane %v605, 1
    %v701 = vsel %vm335, %v622, %v700
    %v702 = vrot.slane %v607, 1
    %v703 = vsel %vm335, %v623, %v702
    %v728 = vsel %vm335, %v688, %v641
    %v729 = vsel %vm335, %v690, %v644
    %v730 = vsel %vm335, %v692, %v647
    %v731 = vsel %vm335, %v694, %v650
    %v732 = vsel %vm335, %v696, %v653
    %v733 = vsel %vm335, %v698, %v656
    %v734 = vsel %vm335, %v700, %v659
    %v735 = vsel %vm335, %v702, %v662
    %v736 = vadd.f32 %v592, %v680
    %v737 = vadd.f32 %v593, %v642
    %v738 = vadd.f32 %v594, %v681
    %v739 = vadd.f32 %v595, %v645
    %v740 = vadd.f32 %v596, %v682
    %v741 = vadd.f32 %v597, %v648
    %v742 = vadd.f32 %v598, %v683
    %v743 = vadd.f32 %v599, %v651
    %v744 = vadd.f32 %v600, %v684
    %v745 = vadd.f32 %v601, %v654
    %v746 = vadd.f32 %v602, %v685
    %v747 = vadd.f32 %v603, %v657
    %v748 = vadd.f32 %v604, %v686
    %v749 = vadd.f32 %v605, %v660
    %v750 = vadd.f32 %v606, %v687
    %v751 = vadd.f32 %v607, %v663
    %v752 = vadd.f32 %v736, %v689
    %v753 = vadd.f32 %v737, %v728
    %v754 = vadd.f32 %v738, %v691
    %v755 = vadd.f32 %v739, %v729
    %v756 = vadd.f32 %v740, %v693
    %v757 = vadd.f32 %v741, %v730
    %v758 = vadd.f32 %v742, %v695
    %v759 = vadd.f32 %v743, %v731
    %v760 = vadd.f32 %v744, %v697
    %v761 = vadd.f32 %v745, %v732
    %v762 = vadd.f32 %v746, %v699
    %v763 = vadd.f32 %v747, %v733
    %v764 = vadd.f32 %v748, %v701
    %v765 = vadd.f32 %v749, %v734
    %v766 = vadd.f32 %v750, %v703
    %v767 = vadd.f32 %v751, %v735
    %v768 = vmul.f32 %v752, 0.11111111
    %v769 = vmul.f32 %v753, 0.11111111
    %v770 = vmul.f32 %v754, 0.11111111
    %v771 = vmul.f32 %v755, 0.11111111
    %v772 = vmul.f32 %v756, 0.11111111
    %v773 = vmul.f32 %v757, 0.11111111
    %v774 = vmul.f32 %v758, 0.11111111
    %v775 = vmul.f32 %v759, 0.11111111
    %v776 = vmul.f32 %v760, 0.11111111
    %v777 = vmul.f32 %v761, 0.11111111
    %v778 = vmul.f32 %v762, 0.11111111
    %v779 = vmul.f32 %v763, 0.11111111
    %v780 = vmul.f32 %v764, 0.11111111
    %v781 = vmul.f32 %v765, 0.11111111
    %v782 = vmul.f32 %v766, 0.11111111
    %v783 = vmul.f32 %v767, 0.11111111
    %v784 = vmul.f32 %v44, %v44
    %v785 = vmul.f32 %v45, %v45
    %v786 = vmul.f32 %v46, %v46
    %v787 = vmul.f32 %v47, %v47
    %v788 = vmul.f32 %v48, %v48
    %v789 = vmul.f32 %v49, %v49
    %v790 = vmul.f32 %v50, %v50
    %v791 = vmul.f32 %v51, %v51
    %v792 = vmul.f32 %v52, %v52
    %v793 = vmul.f32 %v53, %v53
    %v794 = vmul.f32 %v54, %v54
    %v795 = vmul.f32 %v55, %v55
    %v796 = vmul.f32 %v56, %v56
    %v797 = vmul.f32 %v57, %v57
    %v798 = vmul.f32 %v58, %v58
    %v799 = vmul.f32 %v59, %v59
    %816 = vrot.lane.b32.xlu0 %v784, 127
    %v817 = vpop.permute.xlu0 %816
    %818 = vrot.lane.b32.xlu0 %v785, 127
    %v819 = vpop.permute.xlu0 %818
    %820 = vrot.lane.b32.xlu0 %v786, 127
    %v821 = vpop.permute.xlu0 %820
    %822 = vrot.lane.b32.xlu0 %v787, 127
    %v823 = vpop.permute.xlu0 %822
    %824 = vrot.lane.b32.xlu0 %v788, 127
    %v825 = vpop.permute.xlu0 %824
    %826 = vrot.lane.b32.xlu0 %v789, 127
    %v827 = vpop.permute.xlu0 %826
    %828 = vrot.lane.b32.xlu0 %v790, 127
    %v829 = vpop.permute.xlu0 %828
    %830 = vrot.lane.b32.xlu0 %v791, 127
    %v831 = vpop.permute.xlu0 %830
    %832 = vrot.lane.b32.xlu0 %v792, 127
    %v833 = vpop.permute.xlu0 %832
    %834 = vrot.lane.b32.xlu0 %v793, 127
    %v835 = vpop.permute.xlu0 %834
    %836 = vrot.lane.b32.xlu0 %v794, 127
    %v837 = vpop.permute.xlu0 %836
    %838 = vrot.lane.b32.xlu0 %v795, 127
    %v839 = vpop.permute.xlu0 %838
    %840 = vrot.lane.b32.xlu0 %v796, 127
    %v841 = vpop.permute.xlu0 %840
    %842 = vrot.lane.b32.xlu0 %v797, 127
    %v843 = vpop.permute.xlu0 %842
    %844 = vrot.lane.b32.xlu0 %v798, 127
    %v845 = vpop.permute.xlu0 %844
    %846 = vrot.lane.b32.xlu0 %v799, 127
    %v847 = vpop.permute.xlu0 %846
    %864 = vrot.lane.b32.xlu0 %v784, 1
    %v865 = vpop.permute.xlu0 %864
    %866 = vrot.lane.b32.xlu0 %v785, 1
    %v867 = vpop.permute.xlu0 %866
    %868 = vrot.lane.b32.xlu0 %v786, 1
    %v869 = vpop.permute.xlu0 %868
    %870 = vrot.lane.b32.xlu0 %v787, 1
    %v871 = vpop.permute.xlu0 %870
    %872 = vrot.lane.b32.xlu0 %v788, 1
    %v873 = vpop.permute.xlu0 %872
    %874 = vrot.lane.b32.xlu0 %v789, 1
    %v875 = vpop.permute.xlu0 %874
    %876 = vrot.lane.b32.xlu0 %v790, 1
    %v877 = vpop.permute.xlu0 %876
    %878 = vrot.lane.b32.xlu0 %v791, 1
    %v879 = vpop.permute.xlu0 %878
    %880 = vrot.lane.b32.xlu0 %v792, 1
    %v881 = vpop.permute.xlu0 %880
    %882 = vrot.lane.b32.xlu0 %v793, 1
    %v883 = vpop.permute.xlu0 %882
    %884 = vrot.lane.b32.xlu0 %v794, 1
    %v885 = vpop.permute.xlu0 %884
    %886 = vrot.lane.b32.xlu0 %v795, 1
    %v887 = vpop.permute.xlu0 %886
    %888 = vrot.lane.b32.xlu0 %v796, 1
    %v889 = vpop.permute.xlu0 %888
    %890 = vrot.lane.b32.xlu0 %v797, 1
    %v891 = vpop.permute.xlu0 %890
    %892 = vrot.lane.b32.xlu0 %v798, 1
    %v893 = vpop.permute.xlu0 %892
    %894 = vrot.lane.b32.xlu0 %v799, 1
    %v895 = vpop.permute.xlu0 %894
    %v912 = vsel %vm188, %v817, %v865
    %v913 = vsel %vm188, %v819, %v867
    %v914 = vsel %vm188, %v821, %v869
    %v915 = vsel %vm188, %v823, %v871
    %v916 = vsel %vm188, %v825, %v873
    %v917 = vsel %vm188, %v827, %v875
    %v918 = vsel %vm188, %v829, %v877
    %v919 = vsel %vm188, %v831, %v879
    %v920 = vsel %vm188, %v833, %v881
    %v921 = vsel %vm188, %v835, %v883
    %v922 = vsel %vm188, %v837, %v885
    %v923 = vsel %vm188, %v839, %v887
    %v924 = vsel %vm188, %v841, %v889
    %v925 = vsel %vm188, %v843, %v891
    %v926 = vsel %vm188, %v845, %v893
    %v927 = vsel %vm188, %v847, %v895
    %v928 = vsel %vm205, %v817, %v865
    %v929 = vsel %vm205, %v819, %v867
    %v930 = vsel %vm205, %v821, %v869
    %v931 = vsel %vm205, %v823, %v871
    %v932 = vsel %vm205, %v825, %v873
    %v933 = vsel %vm205, %v827, %v875
    %v934 = vsel %vm205, %v829, %v877
    %v935 = vsel %vm205, %v831, %v879
    %v936 = vsel %vm205, %v833, %v881
    %v937 = vsel %vm205, %v835, %v883
    %v938 = vsel %vm205, %v837, %v885
    %v939 = vsel %vm205, %v839, %v887
    %v940 = vsel %vm205, %v841, %v889
    %v941 = vsel %vm205, %v843, %v891
    %v942 = vsel %vm205, %v845, %v893
    %v943 = vsel %vm205, %v847, %v895
    %v944 = vadd.f32 %v784, %v912
    %v945 = vadd.f32 %v785, %v913
    %v946 = vadd.f32 %v786, %v914
    %v947 = vadd.f32 %v787, %v915
    %v948 = vadd.f32 %v788, %v916
    %v949 = vadd.f32 %v789, %v917
    %v950 = vadd.f32 %v790, %v918
    %v951 = vadd.f32 %v791, %v919
    %v952 = vadd.f32 %v792, %v920
    %v953 = vadd.f32 %v793, %v921
    %v954 = vadd.f32 %v794, %v922
    %v955 = vadd.f32 %v795, %v923
    %v956 = vadd.f32 %v796, %v924
    %v957 = vadd.f32 %v797, %v925
    %v958 = vadd.f32 %v798, %v926
    %v959 = vadd.f32 %v799, %v927
    %v960 = vadd.f32 %v944, %v928
    %v961 = vadd.f32 %v945, %v929
    %v962 = vadd.f32 %v946, %v930
    %v963 = vadd.f32 %v947, %v931
    %v964 = vadd.f32 %v948, %v932
    %v965 = vadd.f32 %v949, %v933
    %v966 = vadd.f32 %v950, %v934
    %v967 = vadd.f32 %v951, %v935
    %v968 = vadd.f32 %v952, %v936
    %v969 = vadd.f32 %v953, %v937
    %v970 = vadd.f32 %v954, %v938
    %v971 = vadd.f32 %v955, %v939
    %v972 = vadd.f32 %v956, %v940
    %v973 = vadd.f32 %v957, %v941
    %v974 = vadd.f32 %v958, %v942
    %v975 = vadd.f32 %v959, %v943
    %v984 = vrot.slane %v960, 1
    %v985 = vrot.slane %v962, 1
    %v986 = vrot.slane %v964, 1
    %v987 = vrot.slane %v966, 1
    %v988 = vrot.slane %v968, 1
    %v989 = vrot.slane %v970, 1
    %v990 = vrot.slane %v972, 1
    %v991 = vrot.slane %v974, 1
    %v1008 = vrot.slane %v960, 7
    %v1009 = vrot.slane %v961, 7
    %v1010 = vsel %vm286, %v1008, %v1009
    %v1011 = vrot.slane %v962, 7
    %v1012 = vrot.slane %v963, 7
    %v1013 = vsel %vm286, %v1011, %v1012
    %v1014 = vrot.slane %v964, 7
    %v1015 = vrot.slane %v965, 7
    %v1016 = vsel %vm286, %v1014, %v1015
    %v1017 = vrot.slane %v966, 7
    %v1018 = vrot.slane %v967, 7
    %v1019 = vsel %vm286, %v1017, %v1018
    %v1020 = vrot.slane %v968, 7
    %v1021 = vrot.slane %v969, 7
    %v1022 = vsel %vm286, %v1020, %v1021
    %v1023 = vrot.slane %v970, 7
    %v1024 = vrot.slane %v971, 7
    %v1025 = vsel %vm286, %v1023, %v1024
    %v1026 = vrot.slane %v972, 7
    %v1027 = vrot.slane %v973, 7
    %v1028 = vsel %vm286, %v1026, %v1027
    %v1029 = vrot.slane %v974, 7
    %v1030 = vrot.slane %v975, 7
    %v1031 = vsel %vm286, %v1029, %v1030
    %v1048 = vsel %vm286, %v984, %v1008
    %v1049 = vsel %vm286, %v985, %v1011
    %v1050 = vsel %vm286, %v986, %v1014
    %v1051 = vsel %vm286, %v987, %v1017
    %v1052 = vsel %vm286, %v988, %v1020
    %v1053 = vsel %vm286, %v989, %v1023
    %v1054 = vsel %vm286, %v990, %v1026
    %v1055 = vsel %vm286, %v991, %v1029
    %v1056 = vrot.slane %v961, 1
    %v1057 = vsel %vm335, %v984, %v1056
    %v1058 = vrot.slane %v963, 1
    %v1059 = vsel %vm335, %v985, %v1058
    %v1060 = vrot.slane %v965, 1
    %v1061 = vsel %vm335, %v986, %v1060
    %v1062 = vrot.slane %v967, 1
    %v1063 = vsel %vm335, %v987, %v1062
    %v1064 = vrot.slane %v969, 1
    %v1065 = vsel %vm335, %v988, %v1064
    %v1066 = vrot.slane %v971, 1
    %v1067 = vsel %vm335, %v989, %v1066
    %v1068 = vrot.slane %v973, 1
    %v1069 = vsel %vm335, %v990, %v1068
    %v1070 = vrot.slane %v975, 1
    %v1071 = vsel %vm335, %v991, %v1070
    %v1096 = vsel %vm335, %v1056, %v1009
    %v1097 = vsel %vm335, %v1058, %v1012
    %v1098 = vsel %vm335, %v1060, %v1015
    %v1099 = vsel %vm335, %v1062, %v1018
    %v1100 = vsel %vm335, %v1064, %v1021
    %v1101 = vsel %vm335, %v1066, %v1024
    %v1102 = vsel %vm335, %v1068, %v1027
    %v1103 = vsel %vm335, %v1070, %v1030
    %v1104 = vadd.f32 %v960, %v1048
    %v1105 = vadd.f32 %v961, %v1010
    %v1106 = vadd.f32 %v962, %v1049
    %v1107 = vadd.f32 %v963, %v1013
    %v1108 = vadd.f32 %v964, %v1050
    %v1109 = vadd.f32 %v965, %v1016
    %v1110 = vadd.f32 %v966, %v1051
    %v1111 = vadd.f32 %v967, %v1019
    %v1112 = vadd.f32 %v968, %v1052
    %v1113 = vadd.f32 %v969, %v1022
    %v1114 = vadd.f32 %v970, %v1053
    %v1115 = vadd.f32 %v971, %v1025
    %v1116 = vadd.f32 %v972, %v1054
    %v1117 = vadd.f32 %v973, %v1028
    %v1118 = vadd.f32 %v974, %v1055
    %v1119 = vadd.f32 %v975, %v1031
    %v1120 = vadd.f32 %v1104, %v1057
    %v1121 = vadd.f32 %v1105, %v1096
    %v1122 = vadd.f32 %v1106, %v1059
    %v1123 = vadd.f32 %v1107, %v1097
    %v1124 = vadd.f32 %v1108, %v1061
    %v1125 = vadd.f32 %v1109, %v1098
    %v1126 = vadd.f32 %v1110, %v1063
    %v1127 = vadd.f32 %v1111, %v1099
    %v1128 = vadd.f32 %v1112, %v1065
    %v1129 = vadd.f32 %v1113, %v1100
    %v1130 = vadd.f32 %v1114, %v1067
    %v1131 = vadd.f32 %v1115, %v1101
    %v1132 = vadd.f32 %v1116, %v1069
    %v1133 = vadd.f32 %v1117, %v1102
    %v1134 = vadd.f32 %v1118, %v1071
    %v1135 = vadd.f32 %v1119, %v1103
    %v1136 = vmul.f32 %v1120, 0.11111111
    %v1137 = vmul.f32 %v1121, 0.11111111
    %v1138 = vmul.f32 %v1122, 0.11111111
    %v1139 = vmul.f32 %v1123, 0.11111111
    %v1140 = vmul.f32 %v1124, 0.11111111
    %v1141 = vmul.f32 %v1125, 0.11111111
    %v1142 = vmul.f32 %v1126, 0.11111111
    %v1143 = vmul.f32 %v1127, 0.11111111
    %v1144 = vmul.f32 %v1128, 0.11111111
    %v1145 = vmul.f32 %v1129, 0.11111111
    %v1146 = vmul.f32 %v1130, 0.11111111
    %v1147 = vmul.f32 %v1131, 0.11111111
    %v1148 = vmul.f32 %v1132, 0.11111111
    %v1149 = vmul.f32 %v1133, 0.11111111
    %v1150 = vmul.f32 %v1134, 0.11111111
    %v1151 = vmul.f32 %v1135, 0.11111111
    %v1152 = vmul.f32 %v416, %v416
    %v1153 = vmul.f32 %v417, %v417
    %v1154 = vmul.f32 %v418, %v418
    %v1155 = vmul.f32 %v419, %v419
    %v1156 = vmul.f32 %v420, %v420
    %v1157 = vmul.f32 %v421, %v421
    %v1158 = vmul.f32 %v422, %v422
    %v1159 = vmul.f32 %v423, %v423
    %v1160 = vmul.f32 %v424, %v424
    %v1161 = vmul.f32 %v425, %v425
    %v1162 = vmul.f32 %v426, %v426
    %v1163 = vmul.f32 %v427, %v427
    %v1164 = vmul.f32 %v428, %v428
    %v1165 = vmul.f32 %v429, %v429
    %v1166 = vmul.f32 %v430, %v430
    %v1167 = vmul.f32 %v431, %v431
    %v1168 = vsub.f32 %v1136, %v1152
    %v1169 = vsub.f32 %v1137, %v1153
    %v1170 = vsub.f32 %v1138, %v1154
    %v1171 = vsub.f32 %v1139, %v1155
    %v1172 = vsub.f32 %v1140, %v1156
    %v1173 = vsub.f32 %v1141, %v1157
    %v1174 = vsub.f32 %v1142, %v1158
    %v1175 = vsub.f32 %v1143, %v1159
    %v1176 = vsub.f32 %v1144, %v1160
    %v1177 = vsub.f32 %v1145, %v1161
    %v1178 = vsub.f32 %v1146, %v1162
    %v1179 = vsub.f32 %v1147, %v1163
    %v1180 = vsub.f32 %v1148, %v1164
    %v1181 = vsub.f32 %v1149, %v1165
    %v1182 = vsub.f32 %v1150, %v1166
    %v1183 = vsub.f32 %v1151, %v1167
    %v1184 = vmul.f32 %v60, %v60
    %v1185 = vmul.f32 %v61, %v61
    %v1186 = vmul.f32 %v62, %v62
    %v1187 = vmul.f32 %v63, %v63
    %v1188 = vmul.f32 %v64, %v64
    %v1189 = vmul.f32 %v65, %v65
    %v1190 = vmul.f32 %v66, %v66
    %v1191 = vmul.f32 %v67, %v67
    %v1192 = vmul.f32 %v68, %v68
    %v1193 = vmul.f32 %v69, %v69
    %v1194 = vmul.f32 %v70, %v70
    %v1195 = vmul.f32 %v71, %v71
    %v1196 = vmul.f32 %v72, %v72
    %v1197 = vmul.f32 %v73, %v73
    %v1198 = vmul.f32 %v74, %v74
    %v1199 = vmul.f32 %v75, %v75
    %1216 = vrot.lane.b32.xlu0 %v1184, 127
    %v1217 = vpop.permute.xlu0 %1216
    %1218 = vrot.lane.b32.xlu0 %v1185, 127
    %v1219 = vpop.permute.xlu0 %1218
    %1220 = vrot.lane.b32.xlu0 %v1186, 127
    %v1221 = vpop.permute.xlu0 %1220
    %1222 = vrot.lane.b32.xlu0 %v1187, 127
    %v1223 = vpop.permute.xlu0 %1222
    %1224 = vrot.lane.b32.xlu0 %v1188, 127
    %v1225 = vpop.permute.xlu0 %1224
    %1226 = vrot.lane.b32.xlu0 %v1189, 127
    %v1227 = vpop.permute.xlu0 %1226
    %1228 = vrot.lane.b32.xlu0 %v1190, 127
    %v1229 = vpop.permute.xlu0 %1228
    %1230 = vrot.lane.b32.xlu0 %v1191, 127
    %v1231 = vpop.permute.xlu0 %1230
    %1232 = vrot.lane.b32.xlu0 %v1192, 127
    %v1233 = vpop.permute.xlu0 %1232
    %1234 = vrot.lane.b32.xlu0 %v1193, 127
    %v1235 = vpop.permute.xlu0 %1234
    %1236 = vrot.lane.b32.xlu0 %v1194, 127
    %v1237 = vpop.permute.xlu0 %1236
    %1238 = vrot.lane.b32.xlu0 %v1195, 127
    %v1239 = vpop.permute.xlu0 %1238
    %1240 = vrot.lane.b32.xlu0 %v1196, 127
    %v1241 = vpop.permute.xlu0 %1240
    %1242 = vrot.lane.b32.xlu0 %v1197, 127
    %v1243 = vpop.permute.xlu0 %1242
    %1244 = vrot.lane.b32.xlu0 %v1198, 127
    %v1245 = vpop.permute.xlu0 %1244
    %1246 = vrot.lane.b32.xlu0 %v1199, 127
    %v1247 = vpop.permute.xlu0 %1246
    %1264 = vrot.lane.b32.xlu0 %v1184, 1
    %v1265 = vpop.permute.xlu0 %1264
    %1266 = vrot.lane.b32.xlu0 %v1185, 1
    %v1267 = vpop.permute.xlu0 %1266
    %1268 = vrot.lane.b32.xlu0 %v1186, 1
    %v1269 = vpop.permute.xlu0 %1268
    %1270 = vrot.lane.b32.xlu0 %v1187, 1
    %v1271 = vpop.permute.xlu0 %1270
    %1272 = vrot.lane.b32.xlu0 %v1188, 1
    %v1273 = vpop.permute.xlu0 %1272
    %1274 = vrot.lane.b32.xlu0 %v1189, 1
    %v1275 = vpop.permute.xlu0 %1274
    %1276 = vrot.lane.b32.xlu0 %v1190, 1
    %v1277 = vpop.permute.xlu0 %1276
    %1278 = vrot.lane.b32.xlu0 %v1191, 1
    %v1279 = vpop.permute.xlu0 %1278
    %1280 = vrot.lane.b32.xlu0 %v1192, 1
    %v1281 = vpop.permute.xlu0 %1280
    %1282 = vrot.lane.b32.xlu0 %v1193, 1
    %v1283 = vpop.permute.xlu0 %1282
    %1284 = vrot.lane.b32.xlu0 %v1194, 1
    %v1285 = vpop.permute.xlu0 %1284
    %1286 = vrot.lane.b32.xlu0 %v1195, 1
    %v1287 = vpop.permute.xlu0 %1286
    %1288 = vrot.lane.b32.xlu0 %v1196, 1
    %v1289 = vpop.permute.xlu0 %1288
    %1290 = vrot.lane.b32.xlu0 %v1197, 1
    %v1291 = vpop.permute.xlu0 %1290
    %1292 = vrot.lane.b32.xlu0 %v1198, 1
    %v1293 = vpop.permute.xlu0 %1292
    %1294 = vrot.lane.b32.xlu0 %v1199, 1
    %v1295 = vpop.permute.xlu0 %1294
    %v1312 = vsel %vm188, %v1217, %v1265
    %v1313 = vsel %vm188, %v1219, %v1267
    %v1314 = vsel %vm188, %v1221, %v1269
    %v1315 = vsel %vm188, %v1223, %v1271
    %v1316 = vsel %vm188, %v1225, %v1273
    %v1317 = vsel %vm188, %v1227, %v1275
    %v1318 = vsel %vm188, %v1229, %v1277
    %v1319 = vsel %vm188, %v1231, %v1279
    %v1320 = vsel %vm188, %v1233, %v1281
    %v1321 = vsel %vm188, %v1235, %v1283
    %v1322 = vsel %vm188, %v1237, %v1285
    %v1323 = vsel %vm188, %v1239, %v1287
    %v1324 = vsel %vm188, %v1241, %v1289
    %v1325 = vsel %vm188, %v1243, %v1291
    %v1326 = vsel %vm188, %v1245, %v1293
    %v1327 = vsel %vm188, %v1247, %v1295
    %v1328 = vsel %vm205, %v1217, %v1265
    %v1329 = vsel %vm205, %v1219, %v1267
    %v1330 = vsel %vm205, %v1221, %v1269
    %v1331 = vsel %vm205, %v1223, %v1271
    %v1332 = vsel %vm205, %v1225, %v1273
    %v1333 = vsel %vm205, %v1227, %v1275
    %v1334 = vsel %vm205, %v1229, %v1277
    %v1335 = vsel %vm205, %v1231, %v1279
    %v1336 = vsel %vm205, %v1233, %v1281
    %v1337 = vsel %vm205, %v1235, %v1283
    %v1338 = vsel %vm205, %v1237, %v1285
    %v1339 = vsel %vm205, %v1239, %v1287
    %v1340 = vsel %vm205, %v1241, %v1289
    %v1341 = vsel %vm205, %v1243, %v1291
    %v1342 = vsel %vm205, %v1245, %v1293
    %v1343 = vsel %vm205, %v1247, %v1295
    %v1344 = vadd.f32 %v1184, %v1312
    %v1345 = vadd.f32 %v1185, %v1313
    %v1346 = vadd.f32 %v1186, %v1314
    %v1347 = vadd.f32 %v1187, %v1315
    %v1348 = vadd.f32 %v1188, %v1316
    %v1349 = vadd.f32 %v1189, %v1317
    %v1350 = vadd.f32 %v1190, %v1318
    %v1351 = vadd.f32 %v1191, %v1319
    %v1352 = vadd.f32 %v1192, %v1320
    %v1353 = vadd.f32 %v1193, %v1321
    %v1354 = vadd.f32 %v1194, %v1322
    %v1355 = vadd.f32 %v1195, %v1323
    %v1356 = vadd.f32 %v1196, %v1324
    %v1357 = vadd.f32 %v1197, %v1325
    %v1358 = vadd.f32 %v1198, %v1326
    %v1359 = vadd.f32 %v1199, %v1327
    %v1360 = vadd.f32 %v1344, %v1328
    %v1361 = vadd.f32 %v1345, %v1329
    %v1362 = vadd.f32 %v1346, %v1330
    %v1363 = vadd.f32 %v1347, %v1331
    %v1364 = vadd.f32 %v1348, %v1332
    %v1365 = vadd.f32 %v1349, %v1333
    %v1366 = vadd.f32 %v1350, %v1334
    %v1367 = vadd.f32 %v1351, %v1335
    %v1368 = vadd.f32 %v1352, %v1336
    %v1369 = vadd.f32 %v1353, %v1337
    %v1370 = vadd.f32 %v1354, %v1338
    %v1371 = vadd.f32 %v1355, %v1339
    %v1372 = vadd.f32 %v1356, %v1340
    %v1373 = vadd.f32 %v1357, %v1341
    %v1374 = vadd.f32 %v1358, %v1342
    %v1375 = vadd.f32 %v1359, %v1343
    %v1384 = vrot.slane %v1360, 1
    %v1385 = vrot.slane %v1362, 1
    %v1386 = vrot.slane %v1364, 1
    %v1387 = vrot.slane %v1366, 1
    %v1388 = vrot.slane %v1368, 1
    %v1389 = vrot.slane %v1370, 1
    %v1390 = vrot.slane %v1372, 1
    %v1391 = vrot.slane %v1374, 1
    %v1408 = vrot.slane %v1360, 7
    %v1409 = vrot.slane %v1361, 7
    %v1410 = vsel %vm286, %v1408, %v1409
    %v1411 = vrot.slane %v1362, 7
    %v1412 = vrot.slane %v1363, 7
    %v1413 = vsel %vm286, %v1411, %v1412
    %v1414 = vrot.slane %v1364, 7
    %v1415 = vrot.slane %v1365, 7
    %v1416 = vsel %vm286, %v1414, %v1415
    %v1417 = vrot.slane %v1366, 7
    %v1418 = vrot.slane %v1367, 7
    %v1419 = vsel %vm286, %v1417, %v1418
    %v1420 = vrot.slane %v1368, 7
    %v1421 = vrot.slane %v1369, 7
    %v1422 = vsel %vm286, %v1420, %v1421
    %v1423 = vrot.slane %v1370, 7
    %v1424 = vrot.slane %v1371, 7
    %v1425 = vsel %vm286, %v1423, %v1424
    %v1426 = vrot.slane %v1372, 7
    %v1427 = vrot.slane %v1373, 7
    %v1428 = vsel %vm286, %v1426, %v1427
    %v1429 = vrot.slane %v1374, 7
    %v1430 = vrot.slane %v1375, 7
    %v1431 = vsel %vm286, %v1429, %v1430
    %v1448 = vsel %vm286, %v1384, %v1408
    %v1449 = vsel %vm286, %v1385, %v1411
    %v1450 = vsel %vm286, %v1386, %v1414
    %v1451 = vsel %vm286, %v1387, %v1417
    %v1452 = vsel %vm286, %v1388, %v1420
    %v1453 = vsel %vm286, %v1389, %v1423
    %v1454 = vsel %vm286, %v1390, %v1426
    %v1455 = vsel %vm286, %v1391, %v1429
    %v1456 = vrot.slane %v1361, 1
    %v1457 = vsel %vm335, %v1384, %v1456
    %v1458 = vrot.slane %v1363, 1
    %v1459 = vsel %vm335, %v1385, %v1458
    %v1460 = vrot.slane %v1365, 1
    %v1461 = vsel %vm335, %v1386, %v1460
    %v1462 = vrot.slane %v1367, 1
    %v1463 = vsel %vm335, %v1387, %v1462
    %v1464 = vrot.slane %v1369, 1
    %v1465 = vsel %vm335, %v1388, %v1464
    %v1466 = vrot.slane %v1371, 1
    %v1467 = vsel %vm335, %v1389, %v1466
    %v1468 = vrot.slane %v1373, 1
    %v1469 = vsel %vm335, %v1390, %v1468
    %v1470 = vrot.slane %v1375, 1
    %v1471 = vsel %vm335, %v1391, %v1470
    %v1496 = vsel %vm335, %v1456, %v1409
    %v1497 = vsel %vm335, %v1458, %v1412
    %v1498 = vsel %vm335, %v1460, %v1415
    %v1499 = vsel %vm335, %v1462, %v1418
    %v1500 = vsel %vm335, %v1464, %v1421
    %v1501 = vsel %vm335, %v1466, %v1424
    %v1502 = vsel %vm335, %v1468, %v1427
    %v1503 = vsel %vm335, %v1470, %v1430
    %v1504 = vadd.f32 %v1360, %v1448
    %v1505 = vadd.f32 %v1361, %v1410
    %v1506 = vadd.f32 %v1362, %v1449
    %v1507 = vadd.f32 %v1363, %v1413
    %v1508 = vadd.f32 %v1364, %v1450
    %v1509 = vadd.f32 %v1365, %v1416
    %v1510 = vadd.f32 %v1366, %v1451
    %v1511 = vadd.f32 %v1367, %v1419
    %v1512 = vadd.f32 %v1368, %v1452
    %v1513 = vadd.f32 %v1369, %v1422
    %v1514 = vadd.f32 %v1370, %v1453
    %v1515 = vadd.f32 %v1371, %v1425
    %v1516 = vadd.f32 %v1372, %v1454
    %v1517 = vadd.f32 %v1373, %v1428
    %v1518 = vadd.f32 %v1374, %v1455
    %v1519 = vadd.f32 %v1375, %v1431
    %v1520 = vadd.f32 %v1504, %v1457
    %v1521 = vadd.f32 %v1505, %v1496
    %v1522 = vadd.f32 %v1506, %v1459
    %v1523 = vadd.f32 %v1507, %v1497
    %v1524 = vadd.f32 %v1508, %v1461
    %v1525 = vadd.f32 %v1509, %v1498
    %v1526 = vadd.f32 %v1510, %v1463
    %v1527 = vadd.f32 %v1511, %v1499
    %v1528 = vadd.f32 %v1512, %v1465
    %v1529 = vadd.f32 %v1513, %v1500
    %v1530 = vadd.f32 %v1514, %v1467
    %v1531 = vadd.f32 %v1515, %v1501
    %v1532 = vadd.f32 %v1516, %v1469
    %v1533 = vadd.f32 %v1517, %v1502
    %v1534 = vadd.f32 %v1518, %v1471
    %v1535 = vadd.f32 %v1519, %v1503
    %v1536 = vmul.f32 %v1520, 0.11111111
    %v1537 = vmul.f32 %v1521, 0.11111111
    %v1538 = vmul.f32 %v1522, 0.11111111
    %v1539 = vmul.f32 %v1523, 0.11111111
    %v1540 = vmul.f32 %v1524, 0.11111111
    %v1541 = vmul.f32 %v1525, 0.11111111
    %v1542 = vmul.f32 %v1526, 0.11111111
    %v1543 = vmul.f32 %v1527, 0.11111111
    %v1544 = vmul.f32 %v1528, 0.11111111
    %v1545 = vmul.f32 %v1529, 0.11111111
    %v1546 = vmul.f32 %v1530, 0.11111111
    %v1547 = vmul.f32 %v1531, 0.11111111
    %v1548 = vmul.f32 %v1532, 0.11111111
    %v1549 = vmul.f32 %v1533, 0.11111111
    %v1550 = vmul.f32 %v1534, 0.11111111
    %v1551 = vmul.f32 %v1535, 0.11111111
    %v1552 = vmul.f32 %v768, %v768
    %v1553 = vmul.f32 %v769, %v769
    %v1554 = vmul.f32 %v770, %v770
    %v1555 = vmul.f32 %v771, %v771
    %v1556 = vmul.f32 %v772, %v772
    %v1557 = vmul.f32 %v773, %v773
    %v1558 = vmul.f32 %v774, %v774
    %v1559 = vmul.f32 %v775, %v775
    %v1560 = vmul.f32 %v776, %v776
    %v1561 = vmul.f32 %v777, %v777
    %v1562 = vmul.f32 %v778, %v778
    %v1563 = vmul.f32 %v779, %v779
    %v1564 = vmul.f32 %v780, %v780
    %v1565 = vmul.f32 %v781, %v781
    %v1566 = vmul.f32 %v782, %v782
    %v1567 = vmul.f32 %v783, %v783
    %v1568 = vsub.f32 %v1536, %v1552
    %v1569 = vsub.f32 %v1537, %v1553
    %v1570 = vsub.f32 %v1538, %v1554
    %v1571 = vsub.f32 %v1539, %v1555
    %v1572 = vsub.f32 %v1540, %v1556
    %v1573 = vsub.f32 %v1541, %v1557
    %v1574 = vsub.f32 %v1542, %v1558
    %v1575 = vsub.f32 %v1543, %v1559
    %v1576 = vsub.f32 %v1544, %v1560
    %v1577 = vsub.f32 %v1545, %v1561
    %v1578 = vsub.f32 %v1546, %v1562
    %v1579 = vsub.f32 %v1547, %v1563
    %v1580 = vsub.f32 %v1548, %v1564
    %v1581 = vsub.f32 %v1549, %v1565
    %v1582 = vsub.f32 %v1550, %v1566
    %v1583 = vsub.f32 %v1551, %v1567
    %v1584 = vmul.f32 %v44, %v60
    %v1585 = vmul.f32 %v45, %v61
    %v1586 = vmul.f32 %v46, %v62
    %v1587 = vmul.f32 %v47, %v63
    %v1588 = vmul.f32 %v48, %v64
    %v1589 = vmul.f32 %v49, %v65
    %v1590 = vmul.f32 %v50, %v66
    %v1591 = vmul.f32 %v51, %v67
    %v1592 = vmul.f32 %v52, %v68
    %v1593 = vmul.f32 %v53, %v69
    %v1594 = vmul.f32 %v54, %v70
    %v1595 = vmul.f32 %v55, %v71
    %v1596 = vmul.f32 %v56, %v72
    %v1597 = vmul.f32 %v57, %v73
    %v1598 = vmul.f32 %v58, %v74
    %v1599 = vmul.f32 %v59, %v75
    %1616 = vrot.lane.b32.xlu0 %v1584, 127
    %v1617 = vpop.permute.xlu0 %1616
    %1618 = vrot.lane.b32.xlu0 %v1585, 127
    %v1619 = vpop.permute.xlu0 %1618
    %1620 = vrot.lane.b32.xlu0 %v1586, 127
    %v1621 = vpop.permute.xlu0 %1620
    %1622 = vrot.lane.b32.xlu0 %v1587, 127
    %v1623 = vpop.permute.xlu0 %1622
    %1624 = vrot.lane.b32.xlu0 %v1588, 127
    %v1625 = vpop.permute.xlu0 %1624
    %1626 = vrot.lane.b32.xlu0 %v1589, 127
    %v1627 = vpop.permute.xlu0 %1626
    %1628 = vrot.lane.b32.xlu0 %v1590, 127
    %v1629 = vpop.permute.xlu0 %1628
    %1630 = vrot.lane.b32.xlu0 %v1591, 127
    %v1631 = vpop.permute.xlu0 %1630
    %1632 = vrot.lane.b32.xlu0 %v1592, 127
    %v1633 = vpop.permute.xlu0 %1632
    %1634 = vrot.lane.b32.xlu0 %v1593, 127
    %v1635 = vpop.permute.xlu0 %1634
    %1636 = vrot.lane.b32.xlu0 %v1594, 127
    %v1637 = vpop.permute.xlu0 %1636
    %1638 = vrot.lane.b32.xlu0 %v1595, 127
    %v1639 = vpop.permute.xlu0 %1638
    %1640 = vrot.lane.b32.xlu0 %v1596, 127
    %v1641 = vpop.permute.xlu0 %1640
    %1642 = vrot.lane.b32.xlu0 %v1597, 127
    %v1643 = vpop.permute.xlu0 %1642
    %1644 = vrot.lane.b32.xlu0 %v1598, 127
    %v1645 = vpop.permute.xlu0 %1644
    %1646 = vrot.lane.b32.xlu0 %v1599, 127
    %v1647 = vpop.permute.xlu0 %1646
    %1664 = vrot.lane.b32.xlu0 %v1584, 1
    %v1665 = vpop.permute.xlu0 %1664
    %1666 = vrot.lane.b32.xlu0 %v1585, 1
    %v1667 = vpop.permute.xlu0 %1666
    %1668 = vrot.lane.b32.xlu0 %v1586, 1
    %v1669 = vpop.permute.xlu0 %1668
    %1670 = vrot.lane.b32.xlu0 %v1587, 1
    %v1671 = vpop.permute.xlu0 %1670
    %1672 = vrot.lane.b32.xlu0 %v1588, 1
    %v1673 = vpop.permute.xlu0 %1672
    %1674 = vrot.lane.b32.xlu0 %v1589, 1
    %v1675 = vpop.permute.xlu0 %1674
    %1676 = vrot.lane.b32.xlu0 %v1590, 1
    %v1677 = vpop.permute.xlu0 %1676
    %1678 = vrot.lane.b32.xlu0 %v1591, 1
    %v1679 = vpop.permute.xlu0 %1678
    %1680 = vrot.lane.b32.xlu0 %v1592, 1
    %v1681 = vpop.permute.xlu0 %1680
    %1682 = vrot.lane.b32.xlu0 %v1593, 1
    %v1683 = vpop.permute.xlu0 %1682
    %1684 = vrot.lane.b32.xlu0 %v1594, 1
    %v1685 = vpop.permute.xlu0 %1684
    %1686 = vrot.lane.b32.xlu0 %v1595, 1
    %v1687 = vpop.permute.xlu0 %1686
    %1688 = vrot.lane.b32.xlu0 %v1596, 1
    %v1689 = vpop.permute.xlu0 %1688
    %1690 = vrot.lane.b32.xlu0 %v1597, 1
    %v1691 = vpop.permute.xlu0 %1690
    %1692 = vrot.lane.b32.xlu0 %v1598, 1
    %v1693 = vpop.permute.xlu0 %1692
    %1694 = vrot.lane.b32.xlu0 %v1599, 1
    %v1695 = vpop.permute.xlu0 %1694
    %v1712 = vsel %vm188, %v1617, %v1665
    %v1713 = vsel %vm188, %v1619, %v1667
    %v1714 = vsel %vm188, %v1621, %v1669
    %v1715 = vsel %vm188, %v1623, %v1671
    %v1716 = vsel %vm188, %v1625, %v1673
    %v1717 = vsel %vm188, %v1627, %v1675
    %v1718 = vsel %vm188, %v1629, %v1677
    %v1719 = vsel %vm188, %v1631, %v1679
    %v1720 = vsel %vm188, %v1633, %v1681
    %v1721 = vsel %vm188, %v1635, %v1683
    %v1722 = vsel %vm188, %v1637, %v1685
    %v1723 = vsel %vm188, %v1639, %v1687
    %v1724 = vsel %vm188, %v1641, %v1689
    %v1725 = vsel %vm188, %v1643, %v1691
    %v1726 = vsel %vm188, %v1645, %v1693
    %v1727 = vsel %vm188, %v1647, %v1695
    %v1728 = vsel %vm205, %v1617, %v1665
    %v1729 = vsel %vm205, %v1619, %v1667
    %v1730 = vsel %vm205, %v1621, %v1669
    %v1731 = vsel %vm205, %v1623, %v1671
    %v1732 = vsel %vm205, %v1625, %v1673
    %v1733 = vsel %vm205, %v1627, %v1675
    %v1734 = vsel %vm205, %v1629, %v1677
    %v1735 = vsel %vm205, %v1631, %v1679
    %v1736 = vsel %vm205, %v1633, %v1681
    %v1737 = vsel %vm205, %v1635, %v1683
    %v1738 = vsel %vm205, %v1637, %v1685
    %v1739 = vsel %vm205, %v1639, %v1687
    %v1740 = vsel %vm205, %v1641, %v1689
    %v1741 = vsel %vm205, %v1643, %v1691
    %v1742 = vsel %vm205, %v1645, %v1693
    %v1743 = vsel %vm205, %v1647, %v1695
    %v1744 = vadd.f32 %v1584, %v1712
    %v1745 = vadd.f32 %v1585, %v1713
    %v1746 = vadd.f32 %v1586, %v1714
    %v1747 = vadd.f32 %v1587, %v1715
    %v1748 = vadd.f32 %v1588, %v1716
    %v1749 = vadd.f32 %v1589, %v1717
    %v1750 = vadd.f32 %v1590, %v1718
    %v1751 = vadd.f32 %v1591, %v1719
    %v1752 = vadd.f32 %v1592, %v1720
    %v1753 = vadd.f32 %v1593, %v1721
    %v1754 = vadd.f32 %v1594, %v1722
    %v1755 = vadd.f32 %v1595, %v1723
    %v1756 = vadd.f32 %v1596, %v1724
    %v1757 = vadd.f32 %v1597, %v1725
    %v1758 = vadd.f32 %v1598, %v1726
    %v1759 = vadd.f32 %v1599, %v1727
    %v1760 = vadd.f32 %v1744, %v1728
    %v1761 = vadd.f32 %v1745, %v1729
    %v1762 = vadd.f32 %v1746, %v1730
    %v1763 = vadd.f32 %v1747, %v1731
    %v1764 = vadd.f32 %v1748, %v1732
    %v1765 = vadd.f32 %v1749, %v1733
    %v1766 = vadd.f32 %v1750, %v1734
    %v1767 = vadd.f32 %v1751, %v1735
    %v1768 = vadd.f32 %v1752, %v1736
    %v1769 = vadd.f32 %v1753, %v1737
    %v1770 = vadd.f32 %v1754, %v1738
    %v1771 = vadd.f32 %v1755, %v1739
    %v1772 = vadd.f32 %v1756, %v1740
    %v1773 = vadd.f32 %v1757, %v1741
    %v1774 = vadd.f32 %v1758, %v1742
    %v1775 = vadd.f32 %v1759, %v1743
    %v1784 = vrot.slane %v1760, 1
    %v1785 = vrot.slane %v1762, 1
    %v1786 = vrot.slane %v1764, 1
    %v1787 = vrot.slane %v1766, 1
    %v1788 = vrot.slane %v1768, 1
    %v1789 = vrot.slane %v1770, 1
    %v1790 = vrot.slane %v1772, 1
    %v1791 = vrot.slane %v1774, 1
    %v1808 = vrot.slane %v1760, 7
    %v1809 = vrot.slane %v1761, 7
    %v1810 = vsel %vm286, %v1808, %v1809
    %v1811 = vrot.slane %v1762, 7
    %v1812 = vrot.slane %v1763, 7
    %v1813 = vsel %vm286, %v1811, %v1812
    %v1814 = vrot.slane %v1764, 7
    %v1815 = vrot.slane %v1765, 7
    %v1816 = vsel %vm286, %v1814, %v1815
    %v1817 = vrot.slane %v1766, 7
    %v1818 = vrot.slane %v1767, 7
    %v1819 = vsel %vm286, %v1817, %v1818
    %v1820 = vrot.slane %v1768, 7
    %v1821 = vrot.slane %v1769, 7
    %v1822 = vsel %vm286, %v1820, %v1821
    %v1823 = vrot.slane %v1770, 7
    %v1824 = vrot.slane %v1771, 7
    %v1825 = vsel %vm286, %v1823, %v1824
    %v1826 = vrot.slane %v1772, 7
    %v1827 = vrot.slane %v1773, 7
    %v1828 = vsel %vm286, %v1826, %v1827
    %v1829 = vrot.slane %v1774, 7
    %v1830 = vrot.slane %v1775, 7
    %v1831 = vsel %vm286, %v1829, %v1830
    %v1848 = vsel %vm286, %v1784, %v1808
    %v1849 = vsel %vm286, %v1785, %v1811
    %v1850 = vsel %vm286, %v1786, %v1814
    %v1851 = vsel %vm286, %v1787, %v1817
    %v1852 = vsel %vm286, %v1788, %v1820
    %v1853 = vsel %vm286, %v1789, %v1823
    %v1854 = vsel %vm286, %v1790, %v1826
    %v1855 = vsel %vm286, %v1791, %v1829
    %v1856 = vrot.slane %v1761, 1
    %v1857 = vsel %vm335, %v1784, %v1856
    %v1858 = vrot.slane %v1763, 1
    %v1859 = vsel %vm335, %v1785, %v1858
    %v1860 = vrot.slane %v1765, 1
    %v1861 = vsel %vm335, %v1786, %v1860
    %v1862 = vrot.slane %v1767, 1
    %v1863 = vsel %vm335, %v1787, %v1862
    %v1864 = vrot.slane %v1769, 1
    %v1865 = vsel %vm335, %v1788, %v1864
    %v1866 = vrot.slane %v1771, 1
    %v1867 = vsel %vm335, %v1789, %v1866
    %v1868 = vrot.slane %v1773, 1
    %v1869 = vsel %vm335, %v1790, %v1868
    %v1870 = vrot.slane %v1775, 1
    %v1871 = vsel %vm335, %v1791, %v1870
    %v1896 = vsel %vm335, %v1856, %v1809
    %v1897 = vsel %vm335, %v1858, %v1812
    %v1898 = vsel %vm335, %v1860, %v1815
    %v1899 = vsel %vm335, %v1862, %v1818
    %v1900 = vsel %vm335, %v1864, %v1821
    %v1901 = vsel %vm335, %v1866, %v1824
    %v1902 = vsel %vm335, %v1868, %v1827
    %v1903 = vsel %vm335, %v1870, %v1830
    %v1904 = vadd.f32 %v1760, %v1848
    %v1905 = vadd.f32 %v1761, %v1810
    %v1906 = vadd.f32 %v1762, %v1849
    %v1907 = vadd.f32 %v1763, %v1813
    %v1908 = vadd.f32 %v1764, %v1850
    %v1909 = vadd.f32 %v1765, %v1816
    %v1910 = vadd.f32 %v1766, %v1851
    %v1911 = vadd.f32 %v1767, %v1819
    %v1912 = vadd.f32 %v1768, %v1852
    %v1913 = vadd.f32 %v1769, %v1822
    %v1914 = vadd.f32 %v1770, %v1853
    %v1915 = vadd.f32 %v1771, %v1825
    %v1916 = vadd.f32 %v1772, %v1854
    %v1917 = vadd.f32 %v1773, %v1828
    %v1918 = vadd.f32 %v1774, %v1855
    %v1919 = vadd.f32 %v1775, %v1831
    %v1920 = vadd.f32 %v1904, %v1857
    %v1921 = vadd.f32 %v1905, %v1896
    %v1922 = vadd.f32 %v1906, %v1859
    %v1923 = vadd.f32 %v1907, %v1897
    %v1924 = vadd.f32 %v1908, %v1861
    %v1925 = vadd.f32 %v1909, %v1898
    %v1926 = vadd.f32 %v1910, %v1863
    %v1927 = vadd.f32 %v1911, %v1899
    %v1928 = vadd.f32 %v1912, %v1865
    %v1929 = vadd.f32 %v1913, %v1900
    %v1930 = vadd.f32 %v1914, %v1867
    %v1931 = vadd.f32 %v1915, %v1901
    %v1932 = vadd.f32 %v1916, %v1869
    %v1933 = vadd.f32 %v1917, %v1902
    %v1934 = vadd.f32 %v1918, %v1871
    %v1935 = vadd.f32 %v1919, %v1903
    %v1936 = vmul.f32 %v1920, 0.11111111
    %v1937 = vmul.f32 %v1921, 0.11111111
    %v1938 = vmul.f32 %v1922, 0.11111111
    %v1939 = vmul.f32 %v1923, 0.11111111
    %v1940 = vmul.f32 %v1924, 0.11111111
    %v1941 = vmul.f32 %v1925, 0.11111111
    %v1942 = vmul.f32 %v1926, 0.11111111
    %v1943 = vmul.f32 %v1927, 0.11111111
    %v1944 = vmul.f32 %v1928, 0.11111111
    %v1945 = vmul.f32 %v1929, 0.11111111
    %v1946 = vmul.f32 %v1930, 0.11111111
    %v1947 = vmul.f32 %v1931, 0.11111111
    %v1948 = vmul.f32 %v1932, 0.11111111
    %v1949 = vmul.f32 %v1933, 0.11111111
    %v1950 = vmul.f32 %v1934, 0.11111111
    %v1951 = vmul.f32 %v1935, 0.11111111
    %v1952 = vmul.f32 %v416, %v768
    %v1953 = vmul.f32 %v417, %v769
    %v1954 = vmul.f32 %v418, %v770
    %v1955 = vmul.f32 %v419, %v771
    %v1956 = vmul.f32 %v420, %v772
    %v1957 = vmul.f32 %v421, %v773
    %v1958 = vmul.f32 %v422, %v774
    %v1959 = vmul.f32 %v423, %v775
    %v1960 = vmul.f32 %v424, %v776
    %v1961 = vmul.f32 %v425, %v777
    %v1962 = vmul.f32 %v426, %v778
    %v1963 = vmul.f32 %v427, %v779
    %v1964 = vmul.f32 %v428, %v780
    %v1965 = vmul.f32 %v429, %v781
    %v1966 = vmul.f32 %v430, %v782
    %v1967 = vmul.f32 %v431, %v783
    %v1968 = vsub.f32 %v1936, %v1952
    %v1969 = vsub.f32 %v1937, %v1953
    %v1970 = vsub.f32 %v1938, %v1954
    %v1971 = vsub.f32 %v1939, %v1955
    %v1972 = vsub.f32 %v1940, %v1956
    %v1973 = vsub.f32 %v1941, %v1957
    %v1974 = vsub.f32 %v1942, %v1958
    %v1975 = vsub.f32 %v1943, %v1959
    %v1976 = vsub.f32 %v1944, %v1960
    %v1977 = vsub.f32 %v1945, %v1961
    %v1978 = vsub.f32 %v1946, %v1962
    %v1979 = vsub.f32 %v1947, %v1963
    %v1980 = vsub.f32 %v1948, %v1964
    %v1981 = vsub.f32 %v1949, %v1965
    %v1982 = vsub.f32 %v1950, %v1966
    %v1983 = vsub.f32 %v1951, %v1967
    %v1984 = vmul.f32 %v416, 2.0
    %v1985 = vmul.f32 %v417, 2.0
    %v1986 = vmul.f32 %v418, 2.0
    %v1987 = vmul.f32 %v419, 2.0
    %v1988 = vmul.f32 %v420, 2.0
    %v1989 = vmul.f32 %v421, 2.0
    %v1990 = vmul.f32 %v422, 2.0
    %v1991 = vmul.f32 %v423, 2.0
    %v1992 = vmul.f32 %v424, 2.0
    %v1993 = vmul.f32 %v425, 2.0
    %v1994 = vmul.f32 %v426, 2.0
    %v1995 = vmul.f32 %v427, 2.0
    %v1996 = vmul.f32 %v428, 2.0
    %v1997 = vmul.f32 %v429, 2.0
    %v1998 = vmul.f32 %v430, 2.0
    %v1999 = vmul.f32 %v431, 2.0
    %v2000 = vmul.f32 %v1984, %v768
    %v2001 = vmul.f32 %v1985, %v769
    %v2002 = vmul.f32 %v1986, %v770
    %v2003 = vmul.f32 %v1987, %v771
    %v2004 = vmul.f32 %v1988, %v772
    %v2005 = vmul.f32 %v1989, %v773
    %v2006 = vmul.f32 %v1990, %v774
    %v2007 = vmul.f32 %v1991, %v775
    %v2008 = vmul.f32 %v1992, %v776
    %v2009 = vmul.f32 %v1993, %v777
    %v2010 = vmul.f32 %v1994, %v778
    %v2011 = vmul.f32 %v1995, %v779
    %v2012 = vmul.f32 %v1996, %v780
    %v2013 = vmul.f32 %v1997, %v781
    %v2014 = vmul.f32 %v1998, %v782
    %v2015 = vmul.f32 %v1999, %v783
    %v2016 = vadd.f32 %v2000, 0.0001
    %v2017 = vadd.f32 %v2001, 0.0001
    %v2018 = vadd.f32 %v2002, 0.0001
    %v2019 = vadd.f32 %v2003, 0.0001
    %v2020 = vadd.f32 %v2004, 0.0001
    %v2021 = vadd.f32 %v2005, 0.0001
    %v2022 = vadd.f32 %v2006, 0.0001
    %v2023 = vadd.f32 %v2007, 0.0001
    %v2024 = vadd.f32 %v2008, 0.0001
    %v2025 = vadd.f32 %v2009, 0.0001
    %v2026 = vadd.f32 %v2010, 0.0001
    %v2027 = vadd.f32 %v2011, 0.0001
    %v2028 = vadd.f32 %v2012, 0.0001
    %v2029 = vadd.f32 %v2013, 0.0001
    %v2030 = vadd.f32 %v2014, 0.0001
    %v2031 = vadd.f32 %v2015, 0.0001
    %v2032 = vmul.f32 %v1968, 2.0
    %v2033 = vmul.f32 %v1969, 2.0
    %v2034 = vmul.f32 %v1970, 2.0
    %v2035 = vmul.f32 %v1971, 2.0
    %v2036 = vmul.f32 %v1972, 2.0
    %v2037 = vmul.f32 %v1973, 2.0
    %v2038 = vmul.f32 %v1974, 2.0
    %v2039 = vmul.f32 %v1975, 2.0
    %v2040 = vmul.f32 %v1976, 2.0
    %v2041 = vmul.f32 %v1977, 2.0
    %v2042 = vmul.f32 %v1978, 2.0
    %v2043 = vmul.f32 %v1979, 2.0
    %v2044 = vmul.f32 %v1980, 2.0
    %v2045 = vmul.f32 %v1981, 2.0
    %v2046 = vmul.f32 %v1982, 2.0
    %v2047 = vmul.f32 %v1983, 2.0
    %v2048 = vadd.f32 %v2032, 0.0009
    %v2049 = vadd.f32 %v2033, 0.0009
    %v2050 = vadd.f32 %v2034, 0.0009
    %v2051 = vadd.f32 %v2035, 0.0009
    %v2052 = vadd.f32 %v2036, 0.0009
    %v2053 = vadd.f32 %v2037, 0.0009
    %v2054 = vadd.f32 %v2038, 0.0009
    %v2055 = vadd.f32 %v2039, 0.0009
    %v2056 = vadd.f32 %v2040, 0.0009
    %v2057 = vadd.f32 %v2041, 0.0009
    %v2058 = vadd.f32 %v2042, 0.0009
    %v2059 = vadd.f32 %v2043, 0.0009
    %v2060 = vadd.f32 %v2044, 0.0009
    %v2061 = vadd.f32 %v2045, 0.0009
    %v2062 = vadd.f32 %v2046, 0.0009
    %v2063 = vadd.f32 %v2047, 0.0009
    %v2064 = vmul.f32 %v2016, %v2048
    %v2065 = vmul.f32 %v2017, %v2049
    %v2066 = vmul.f32 %v2018, %v2050
    %v2067 = vmul.f32 %v2019, %v2051
    %v2068 = vmul.f32 %v2020, %v2052
    %v2069 = vmul.f32 %v2021, %v2053
    %v2070 = vmul.f32 %v2022, %v2054
    %v2071 = vmul.f32 %v2023, %v2055
    %v2072 = vmul.f32 %v2024, %v2056
    %v2073 = vmul.f32 %v2025, %v2057
    %v2074 = vmul.f32 %v2026, %v2058
    %v2075 = vmul.f32 %v2027, %v2059
    %v2076 = vmul.f32 %v2028, %v2060
    %v2077 = vmul.f32 %v2029, %v2061
    %v2078 = vmul.f32 %v2030, %v2062
    %v2079 = vmul.f32 %v2031, %v2063
    %v2080 = vadd.f32 %v1152, %v1552
    %v2081 = vadd.f32 %v1153, %v1553
    %v2082 = vadd.f32 %v1154, %v1554
    %v2083 = vadd.f32 %v1155, %v1555
    %v2084 = vadd.f32 %v1156, %v1556
    %v2085 = vadd.f32 %v1157, %v1557
    %v2086 = vadd.f32 %v1158, %v1558
    %v2087 = vadd.f32 %v1159, %v1559
    %v2088 = vadd.f32 %v1160, %v1560
    %v2089 = vadd.f32 %v1161, %v1561
    %v2090 = vadd.f32 %v1162, %v1562
    %v2091 = vadd.f32 %v1163, %v1563
    %v2092 = vadd.f32 %v1164, %v1564
    %v2093 = vadd.f32 %v1165, %v1565
    %v2094 = vadd.f32 %v1166, %v1566
    %v2095 = vadd.f32 %v1167, %v1567
    %v2096 = vadd.f32 %v2080, 0.0001
    %v2097 = vadd.f32 %v2081, 0.0001
    %v2098 = vadd.f32 %v2082, 0.0001
    %v2099 = vadd.f32 %v2083, 0.0001
    %v2100 = vadd.f32 %v2084, 0.0001
    %v2101 = vadd.f32 %v2085, 0.0001
    %v2102 = vadd.f32 %v2086, 0.0001
    %v2103 = vadd.f32 %v2087, 0.0001
    %v2104 = vadd.f32 %v2088, 0.0001
    %v2105 = vadd.f32 %v2089, 0.0001
    %v2106 = vadd.f32 %v2090, 0.0001
    %v2107 = vadd.f32 %v2091, 0.0001
    %v2108 = vadd.f32 %v2092, 0.0001
    %v2109 = vadd.f32 %v2093, 0.0001
    %v2110 = vadd.f32 %v2094, 0.0001
    %v2111 = vadd.f32 %v2095, 0.0001
    %v2112 = vadd.f32 %v1168, %v1568
    %v2113 = vadd.f32 %v1169, %v1569
    %v2114 = vadd.f32 %v1170, %v1570
    %v2115 = vadd.f32 %v1171, %v1571
    %v2116 = vadd.f32 %v1172, %v1572
    %v2117 = vadd.f32 %v1173, %v1573
    %v2118 = vadd.f32 %v1174, %v1574
    %v2119 = vadd.f32 %v1175, %v1575
    %v2120 = vadd.f32 %v1176, %v1576
    %v2121 = vadd.f32 %v1177, %v1577
    %v2122 = vadd.f32 %v1178, %v1578
    %v2123 = vadd.f32 %v1179, %v1579
    %v2124 = vadd.f32 %v1180, %v1580
    %v2125 = vadd.f32 %v1181, %v1581
    %v2126 = vadd.f32 %v1182, %v1582
    %v2127 = vadd.f32 %v1183, %v1583
    %v2128 = vadd.f32 %v2112, 0.0009
    %v2129 = vadd.f32 %v2113, 0.0009
    %v2130 = vadd.f32 %v2114, 0.0009
    %v2131 = vadd.f32 %v2115, 0.0009
    %v2132 = vadd.f32 %v2116, 0.0009
    %v2133 = vadd.f32 %v2117, 0.0009
    %v2134 = vadd.f32 %v2118, 0.0009
    %v2135 = vadd.f32 %v2119, 0.0009
    %v2136 = vadd.f32 %v2120, 0.0009
    %v2137 = vadd.f32 %v2121, 0.0009
    %v2138 = vadd.f32 %v2122, 0.0009
    %v2139 = vadd.f32 %v2123, 0.0009
    %v2140 = vadd.f32 %v2124, 0.0009
    %v2141 = vadd.f32 %v2125, 0.0009
    %v2142 = vadd.f32 %v2126, 0.0009
    %v2143 = vadd.f32 %v2127, 0.0009
    %v2144 = vmul.f32 %v2096, %v2128
    %v2145 = vmul.f32 %v2097, %v2129
    %v2146 = vmul.f32 %v2098, %v2130
    %v2147 = vmul.f32 %v2099, %v2131
    %v2148 = vmul.f32 %v2100, %v2132
    %v2149 = vmul.f32 %v2101, %v2133
    %v2150 = vmul.f32 %v2102, %v2134
    %v2151 = vmul.f32 %v2103, %v2135
    %v2152 = vmul.f32 %v2104, %v2136
    %v2153 = vmul.f32 %v2105, %v2137
    %v2154 = vmul.f32 %v2106, %v2138
    %v2155 = vmul.f32 %v2107, %v2139
    %v2156 = vmul.f32 %v2108, %v2140
    %v2157 = vmul.f32 %v2109, %v2141
    %v2158 = vmul.f32 %v2110, %v2142
    %v2159 = vmul.f32 %v2111, %v2143
    %v2160 = vrcp.pop %v2144
    %v2161 = vmul.f32 %v2144, %v2160
    %v2162 = vsub.f32 1.0, %v2161
    %v2163 = vmul.f32 %v2160, %v2162
    %v2164 = vadd.f32 %v2160, %v2163
    %vm2165 = vweird.f32 %v2144
    %vm2166 = vweird.f32 %v2160
    %vm2167 = vmor %vm2165, %vm2166
    %v2168 = vsel %vm2167, %v2160, %v2164
    %v2169 = vand.u32 2147483647, %v2144
    %vm2170 = vcmp.eq.f32.partialorder %v2169, 8.507059e+37
    %v2171 = vand.u32 %v2144, 2147483648
    %v2172 = vor.u32 1.1754944e-38, %v2171
    %v2173 = vsel %vm2170, %v2172, %v2168
    %v2174 = vrcp.pop %v2145
    %v2175 = vmul.f32 %v2145, %v2174
    %v2176 = vsub.f32 1.0, %v2175
    %v2177 = vmul.f32 %v2174, %v2176
    %v2178 = vadd.f32 %v2174, %v2177
    %vm2179 = vweird.f32 %v2145
    %vm2180 = vweird.f32 %v2174
    %vm2181 = vmor %vm2179, %vm2180
    %v2182 = vsel %vm2181, %v2174, %v2178
    %v2183 = vand.u32 2147483647, %v2145
    %vm2184 = vcmp.eq.f32.partialorder %v2183, 8.507059e+37
    %v2185 = vand.u32 %v2145, 2147483648
    %v2186 = vor.u32 1.1754944e-38, %v2185
    %v2187 = vsel %vm2184, %v2186, %v2182
    %v2188 = vrcp.pop %v2146
    %v2189 = vmul.f32 %v2146, %v2188
    %v2190 = vsub.f32 1.0, %v2189
    %v2191 = vmul.f32 %v2188, %v2190
    %v2192 = vadd.f32 %v2188, %v2191
    %vm2193 = vweird.f32 %v2146
    %vm2194 = vweird.f32 %v2188
    %vm2195 = vmor %vm2193, %vm2194
    %v2196 = vsel %vm2195, %v2188, %v2192
    %v2197 = vand.u32 2147483647, %v2146
    %vm2198 = vcmp.eq.f32.partialorder %v2197, 8.507059e+37
    %v2199 = vand.u32 %v2146, 2147483648
    %v2200 = vor.u32 1.1754944e-38, %v2199
    %v2201 = vsel %vm2198, %v2200, %v2196
    %v2202 = vrcp.pop %v2147
    %v2203 = vmul.f32 %v2147, %v2202
    %v2204 = vsub.f32 1.0, %v2203
    %v2205 = vmul.f32 %v2202, %v2204
    %v2206 = vadd.f32 %v2202, %v2205
    %vm2207 = vweird.f32 %v2147
    %vm2208 = vweird.f32 %v2202
    %vm2209 = vmor %vm2207, %vm2208
    %v2210 = vsel %vm2209, %v2202, %v2206
    %v2211 = vand.u32 2147483647, %v2147
    %vm2212 = vcmp.eq.f32.partialorder %v2211, 8.507059e+37
    %v2213 = vand.u32 %v2147, 2147483648
    %v2214 = vor.u32 1.1754944e-38, %v2213
    %v2215 = vsel %vm2212, %v2214, %v2210
    %v2216 = vrcp.pop %v2148
    %v2217 = vmul.f32 %v2148, %v2216
    %v2218 = vsub.f32 1.0, %v2217
    %v2219 = vmul.f32 %v2216, %v2218
    %v2220 = vadd.f32 %v2216, %v2219
    %vm2221 = vweird.f32 %v2148
    %vm2222 = vweird.f32 %v2216
    %vm2223 = vmor %vm2221, %vm2222
    %v2224 = vsel %vm2223, %v2216, %v2220
    %v2225 = vand.u32 2147483647, %v2148
    %vm2226 = vcmp.eq.f32.partialorder %v2225, 8.507059e+37
    %v2227 = vand.u32 %v2148, 2147483648
    %v2228 = vor.u32 1.1754944e-38, %v2227
    %v2229 = vsel %vm2226, %v2228, %v2224
    %v2230 = vrcp.pop %v2149
    %v2231 = vmul.f32 %v2149, %v2230
    %v2232 = vsub.f32 1.0, %v2231
    %v2233 = vmul.f32 %v2230, %v2232
    %v2234 = vadd.f32 %v2230, %v2233
    %vm2235 = vweird.f32 %v2149
    %vm2236 = vweird.f32 %v2230
    %vm2237 = vmor %vm2235, %vm2236
    %v2238 = vsel %vm2237, %v2230, %v2234
    %v2239 = vand.u32 2147483647, %v2149
    %vm2240 = vcmp.eq.f32.partialorder %v2239, 8.507059e+37
    %v2241 = vand.u32 %v2149, 2147483648
    %v2242 = vor.u32 1.1754944e-38, %v2241
    %v2243 = vsel %vm2240, %v2242, %v2238
    %v2244 = vrcp.pop %v2150
    %v2245 = vmul.f32 %v2150, %v2244
    %v2246 = vsub.f32 1.0, %v2245
    %v2247 = vmul.f32 %v2244, %v2246
    %v2248 = vadd.f32 %v2244, %v2247
    %vm2249 = vweird.f32 %v2150
    %vm2250 = vweird.f32 %v2244
    %vm2251 = vmor %vm2249, %vm2250
    %v2252 = vsel %vm2251, %v2244, %v2248
    %v2253 = vand.u32 2147483647, %v2150
    %vm2254 = vcmp.eq.f32.partialorder %v2253, 8.507059e+37
    %v2255 = vand.u32 %v2150, 2147483648
    %v2256 = vor.u32 1.1754944e-38, %v2255
    %v2257 = vsel %vm2254, %v2256, %v2252
    %v2258 = vrcp.pop %v2151
    %v2259 = vmul.f32 %v2151, %v2258
    %v2260 = vsub.f32 1.0, %v2259
    %v2261 = vmul.f32 %v2258, %v2260
    %v2262 = vadd.f32 %v2258, %v2261
    %vm2263 = vweird.f32 %v2151
    %vm2264 = vweird.f32 %v2258
    %vm2265 = vmor %vm2263, %vm2264
    %v2266 = vsel %vm2265, %v2258, %v2262
    %v2267 = vand.u32 2147483647, %v2151
    %vm2268 = vcmp.eq.f32.partialorder %v2267, 8.507059e+37
    %v2269 = vand.u32 %v2151, 2147483648
    %v2270 = vor.u32 1.1754944e-38, %v2269
    %v2271 = vsel %vm2268, %v2270, %v2266
    %v2272 = vrcp.pop %v2152
    %v2273 = vmul.f32 %v2152, %v2272
    %v2274 = vsub.f32 1.0, %v2273
    %v2275 = vmul.f32 %v2272, %v2274
    %v2276 = vadd.f32 %v2272, %v2275
    %vm2277 = vweird.f32 %v2152
    %vm2278 = vweird.f32 %v2272
    %vm2279 = vmor %vm2277, %vm2278
    %v2280 = vsel %vm2279, %v2272, %v2276
    %v2281 = vand.u32 2147483647, %v2152
    %vm2282 = vcmp.eq.f32.partialorder %v2281, 8.507059e+37
    %v2283 = vand.u32 %v2152, 2147483648
    %v2284 = vor.u32 1.1754944e-38, %v2283
    %v2285 = vsel %vm2282, %v2284, %v2280
    %v2286 = vrcp.pop %v2153
    %v2287 = vmul.f32 %v2153, %v2286
    %v2288 = vsub.f32 1.0, %v2287
    %v2289 = vmul.f32 %v2286, %v2288
    %v2290 = vadd.f32 %v2286, %v2289
    %vm2291 = vweird.f32 %v2153
    %vm2292 = vweird.f32 %v2286
    %vm2293 = vmor %vm2291, %vm2292
    %v2294 = vsel %vm2293, %v2286, %v2290
    %v2295 = vand.u32 2147483647, %v2153
    %vm2296 = vcmp.eq.f32.partialorder %v2295, 8.507059e+37
    %v2297 = vand.u32 %v2153, 2147483648
    %v2298 = vor.u32 1.1754944e-38, %v2297
    %v2299 = vsel %vm2296, %v2298, %v2294
    %v2300 = vrcp.pop %v2154
    %v2301 = vmul.f32 %v2154, %v2300
    %v2302 = vsub.f32 1.0, %v2301
    %v2303 = vmul.f32 %v2300, %v2302
    %v2304 = vadd.f32 %v2300, %v2303
    %vm2305 = vweird.f32 %v2154
    %vm2306 = vweird.f32 %v2300
    %vm2307 = vmor %vm2305, %vm2306
    %v2308 = vsel %vm2307, %v2300, %v2304
    %v2309 = vand.u32 2147483647, %v2154
    %vm2310 = vcmp.eq.f32.partialorder %v2309, 8.507059e+37
    %v2311 = vand.u32 %v2154, 2147483648
    %v2312 = vor.u32 1.1754944e-38, %v2311
    %v2313 = vsel %vm2310, %v2312, %v2308
    %v2314 = vrcp.pop %v2155
    %v2315 = vmul.f32 %v2155, %v2314
    %v2316 = vsub.f32 1.0, %v2315
    %v2317 = vmul.f32 %v2314, %v2316
    %v2318 = vadd.f32 %v2314, %v2317
    %vm2319 = vweird.f32 %v2155
    %vm2320 = vweird.f32 %v2314
    %vm2321 = vmor %vm2319, %vm2320
    %v2322 = vsel %vm2321, %v2314, %v2318
    %v2323 = vand.u32 2147483647, %v2155
    %vm2324 = vcmp.eq.f32.partialorder %v2323, 8.507059e+37
    %v2325 = vand.u32 %v2155, 2147483648
    %v2326 = vor.u32 1.1754944e-38, %v2325
    %v2327 = vsel %vm2324, %v2326, %v2322
    %v2328 = vrcp.pop %v2156
    %v2329 = vmul.f32 %v2156, %v2328
    %v2330 = vsub.f32 1.0, %v2329
    %v2331 = vmul.f32 %v2328, %v2330
    %v2332 = vadd.f32 %v2328, %v2331
    %vm2333 = vweird.f32 %v2156
    %vm2334 = vweird.f32 %v2328
    %vm2335 = vmor %vm2333, %vm2334
    %v2336 = vsel %vm2335, %v2328, %v2332
    %v2337 = vand.u32 2147483647, %v2156
    %vm2338 = vcmp.eq.f32.partialorder %v2337, 8.507059e+37
    %v2339 = vand.u32 %v2156, 2147483648
    %v2340 = vor.u32 1.1754944e-38, %v2339
    %v2341 = vsel %vm2338, %v2340, %v2336
    %v2342 = vrcp.pop %v2157
    %v2343 = vmul.f32 %v2157, %v2342
    %v2344 = vsub.f32 1.0, %v2343
    %v2345 = vmul.f32 %v2342, %v2344
    %v2346 = vadd.f32 %v2342, %v2345
    %vm2347 = vweird.f32 %v2157
    %vm2348 = vweird.f32 %v2342
    %vm2349 = vmor %vm2347, %vm2348
    %v2350 = vsel %vm2349, %v2342, %v2346
    %v2351 = vand.u32 2147483647, %v2157
    %vm2352 = vcmp.eq.f32.partialorder %v2351, 8.507059e+37
    %v2353 = vand.u32 %v2157, 2147483648
    %v2354 = vor.u32 1.1754944e-38, %v2353
    %v2355 = vsel %vm2352, %v2354, %v2350
    %v2356 = vrcp.pop %v2158
    %v2357 = vmul.f32 %v2158, %v2356
    %v2358 = vsub.f32 1.0, %v2357
    %v2359 = vmul.f32 %v2356, %v2358
    %v2360 = vadd.f32 %v2356, %v2359
    %vm2361 = vweird.f32 %v2158
    %vm2362 = vweird.f32 %v2356
    %vm2363 = vmor %vm2361, %vm2362
    %v2364 = vsel %vm2363, %v2356, %v2360
    %v2365 = vand.u32 2147483647, %v2158
    %vm2366 = vcmp.eq.f32.partialorder %v2365, 8.507059e+37
    %v2367 = vand.u32 %v2158, 2147483648
    %v2368 = vor.u32 1.1754944e-38, %v2367
    %v2369 = vsel %vm2366, %v2368, %v2364
    %v2370 = vrcp.pop %v2159
    %v2371 = vmul.f32 %v2159, %v2370
    %v2372 = vsub.f32 1.0, %v2371
    %v2373 = vmul.f32 %v2370, %v2372
    %v2374 = vadd.f32 %v2370, %v2373
    %vm2375 = vweird.f32 %v2159
    %vm2376 = vweird.f32 %v2370
    %vm2377 = vmor %vm2375, %vm2376
    %v2378 = vsel %vm2377, %v2370, %v2374
    %v2379 = vand.u32 2147483647, %v2159
    %vm2380 = vcmp.eq.f32.partialorder %v2379, 8.507059e+37
    %v2381 = vand.u32 %v2159, 2147483648
    %v2382 = vor.u32 1.1754944e-38, %v2381
    %v2383 = vsel %vm2380, %v2382, %v2378
    %v2384 = vmul.f32 %v2064, %v2173
    %v2385 = vmul.f32 %v2065, %v2187
    %v2386 = vmul.f32 %v2066, %v2201
    %v2387 = vmul.f32 %v2067, %v2215
    %v2388 = vmul.f32 %v2068, %v2229
    %v2389 = vmul.f32 %v2069, %v2243
    %v2390 = vmul.f32 %v2070, %v2257
    %v2391 = vmul.f32 %v2071, %v2271
    %v2392 = vmul.f32 %v2072, %v2285
    %v2393 = vmul.f32 %v2073, %v2299
    %v2394 = vmul.f32 %v2074, %v2313
    %v2395 = vmul.f32 %v2075, %v2327
    %v2396 = vmul.f32 %v2076, %v2341
    %v2397 = vmul.f32 %v2077, %v2355
    %v2398 = vmul.f32 %v2078, %v2369
    %v2399 = vmul.f32 %v2079, %v2383
    %v2400 = vsub.f32 1.0, %v2384
    %v2401 = vsub.f32 1.0, %v2385
    %v2402 = vsub.f32 1.0, %v2386
    %v2403 = vsub.f32 1.0, %v2387
    %v2404 = vsub.f32 1.0, %v2388
    %v2405 = vsub.f32 1.0, %v2389
    %v2406 = vsub.f32 1.0, %v2390
    %v2407 = vsub.f32 1.0, %v2391
    %v2408 = vsub.f32 1.0, %v2392
    %v2409 = vsub.f32 1.0, %v2393
    %v2410 = vsub.f32 1.0, %v2394
    %v2411 = vsub.f32 1.0, %v2395
    %v2412 = vsub.f32 1.0, %v2396
    %v2413 = vsub.f32 1.0, %v2397
    %v2414 = vsub.f32 1.0, %v2398
    %v2415 = vsub.f32 1.0, %v2399
    %v2416 = vmul.f32 %v2400, 0.5
    %v2417 = vmul.f32 %v2401, 0.5
    %v2418 = vmul.f32 %v2402, 0.5
    %v2419 = vmul.f32 %v2403, 0.5
    %v2420 = vmul.f32 %v2404, 0.5
    %v2421 = vmul.f32 %v2405, 0.5
    %v2422 = vmul.f32 %v2406, 0.5
    %v2423 = vmul.f32 %v2407, 0.5
    %v2424 = vmul.f32 %v2408, 0.5
    %v2425 = vmul.f32 %v2409, 0.5
    %v2426 = vmul.f32 %v2410, 0.5
    %v2427 = vmul.f32 %v2411, 0.5
    %v2428 = vmul.f32 %v2412, 0.5
    %v2429 = vmul.f32 %v2413, 0.5
    %v2430 = vmul.f32 %v2414, 0.5
    %v2431 = vmul.f32 %v2415, 0.5
    %v2432 = vmax.f32 %v2416, 0.0
    %v2433 = vmax.f32 %v2417, 0.0
    %v2434 = vmax.f32 %v2418, 0.0
    %v2435 = vmax.f32 %v2419, 0.0
    %v2436 = vmax.f32 %v2420, 0.0
    %v2437 = vmax.f32 %v2421, 0.0
    %v2438 = vmax.f32 %v2422, 0.0
    %v2439 = vmax.f32 %v2423, 0.0
    %v2440 = vmax.f32 %v2424, 0.0
    %v2441 = vmax.f32 %v2425, 0.0
    %v2442 = vmax.f32 %v2426, 0.0
    %v2443 = vmax.f32 %v2427, 0.0
    %v2444 = vmax.f32 %v2428, 0.0
    %v2445 = vmax.f32 %v2429, 0.0
    %v2446 = vmax.f32 %v2430, 0.0
    %v2447 = vmax.f32 %v2431, 0.0
    %v2448 = vmin.f32 %v2432, 1.0
    %v2449 = vmin.f32 %v2433, 1.0
    %v2450 = vmin.f32 %v2434, 1.0
    %v2451 = vmin.f32 %v2435, 1.0
    %v2452 = vmin.f32 %v2436, 1.0
    %v2453 = vmin.f32 %v2437, 1.0
    %v2454 = vmin.f32 %v2438, 1.0
    %v2455 = vmin.f32 %v2439, 1.0
    %v2456 = vmin.f32 %v2440, 1.0
    %v2457 = vmin.f32 %v2441, 1.0
    %v2458 = vmin.f32 %v2442, 1.0
    %v2459 = vmin.f32 %v2443, 1.0
    %v2460 = vmin.f32 %v2444, 1.0
    %v2461 = vmin.f32 %v2445, 1.0
    %v2462 = vmin.f32 %v2446, 1.0
    %v2463 = vmin.f32 %v2447, 1.0
    %vm2464 = vcmask 130048
    %2465 = vst.msk [vmem:[#allocation7] sm:$0xff] %vm2464, %v2448
    %2466 = vst.msk [vmem:[#allocation7 + $0x8] sm:$0xff] %vm2464, %v2449
    %2467 = vst.msk [vmem:[#allocation7 + $0x10] sm:$0xff] %vm2464, %v2450
    %2468 = vst.msk [vmem:[#allocation7 + $0x18] sm:$0xff] %vm2464, %v2451
    %2469 = vst.msk [vmem:[#allocation7 + $0x20] sm:$0xff] %vm2464, %v2452
    %2470 = vst.msk [vmem:[#allocation7 + $0x28] sm:$0xff] %vm2464, %v2453
    %2471 = vst.msk [vmem:[#allocation7 + $0x30] sm:$0xff] %vm2464, %v2454
    %2472 = vst.msk [vmem:[#allocation7 + $0x38] sm:$0xff] %vm2464, %v2455
    %2473 = vst.msk [vmem:[#allocation7 + $0x40] sm:$0xff] %vm2464, %v2456
    %2474 = vst.msk [vmem:[#allocation7 + $0x48] sm:$0xff] %vm2464, %v2457
    %2475 = vst.msk [vmem:[#allocation7 + $0x50] sm:$0xff] %vm2464, %v2458
    %2476 = vst.msk [vmem:[#allocation7 + $0x58] sm:$0xff] %vm2464, %v2459
    %2477 = vst.msk [vmem:[#allocation7 + $0x60] sm:$0xff] %vm2464, %v2460
    %2478 = vst.msk [vmem:[#allocation7 + $0x68] sm:$0xff] %vm2464, %v2461
    %2479 = vst.msk [vmem:[#allocation7 + $0x70] sm:$0xff] %vm2464, %v2462
    %2480 = vst.msk [vmem:[#allocation7 + $0x78] sm:$0xff] %vm2464, %v2463
    // Predicated region
    $region18: #{tpu_custom_call.1} parent=1 // pred_check
      _
    $region19: #{tpu_custom_call.1} parent=1 // pred_check_branch
      %2482 = sbr.rel (0) target = $region21
    $region20: #{tpu_custom_call.1} parent=1 // pred_region
      %2484 = vsyncadd [#allocation4], 0
      %s2485 = sshll.u32 [#allocation7], 4
      %s2486 = int_to_ptr.vmem [resolvable:$true] %s2485
      %s2487 = sshll.u32 %s2, 4
      %s2488 = int_to_ptr.hbm [resolvable:$true] %s2487
      %2493 = dma.vmem_to_hbm [thread:$0]  %s2486, 2048, %s2488, [#allocation4], 128, 128, 8
    $region21: #{tpu_custom_call.1} parent=1 // pred_fallthru
      _
    // Predicated region
    $region22: #{tpu_custom_call.1} parent=1 // pred_check
      _
    $region23: #{tpu_custom_call.1} parent=1 // pred_check_branch
      %2495 = sbr.rel (0) target = $region25
    $region24: #{tpu_custom_call.1} parent=1 // pred_region
      %2497 = dma.done [#allocation4], 2048
    $region25: #{tpu_custom_call.1} parent=1 // pred_fallthru
      _
    %2498 = vsyncpa [#allocation3], 1
    %2499 = vsyncpa [#allocation6], 1
    %2500 = vsyncpa [#allocation4], 1

</llo_original>
